<compile_context>
chip_gen: v7x
topology: tpu7x:2x2x1
jax: 0.10.0
libtpu: 0.0.40
codegen_flags: <defaults>
</compile_context>

<pallas_src>
import functools

import jax
import jax.numpy as jnp
from jax.experimental import pallas as pl
from jax.experimental.pallas import tpu as pltpu


# ----------------------------- Pallas kernel --------------------------------
def encoder_kernel(patches_ref, convw_ref, convb_ref, linw_ref, linb_ref,
                   out_ref):
    # patches_ref : (B*P, Kp)    bf16  im2col rows, b-major (row = b*P + p)
    # convw_ref   : (Kp, Cp)     bf16  conv taps (zero-pad 675->768) x channels (pad 32->128)
    # convb_ref   : (1, Cp)      f32   conv bias, zero-padded channels
    # linw_ref    : (P*Cp, L)    f32   linear weight, rows ordered (p*Cp + c), padded rows zero
    # linb_ref    : (1, L)       f32
    # out_ref     : (B, L)       f32
    BP = patches_ref.shape[0]
    B, _ = out_ref.shape
    Cp = convw_ref.shape[1]
    P = BP // B

    # Conv3d == one im2col matmul on the MXU (bf16 in, f32 accumulate);
    # bias + ReLU on the VPU in f32.
    h = jnp.dot(patches_ref[...], convw_ref[...],
                preferred_element_type=jnp.float32)            # (B*P, Cp)
    h = jnp.maximum(h + convb_ref[...], 0.0)

    # (B*P, Cp) -> (B, P*Cp): Cp == 128 makes this a 128-lane-aligned row-major
    # fold (layout-trivial relabeling of lane tiles), replacing the former
    # 48-iteration masked-store relayout loop.
    h2 = h.reshape(B, P * Cp)

    # Single fused (B, P*Cp) @ (P*Cp, L) dot; h kept in f32 for accuracy.
    out = jnp.dot(h2, linw_ref[...], preferred_element_type=jnp.float32)
    out_ref[...] = out + linb_ref[...]


# --------------------- one-time parameter preparation ------------------------
def prepare_encoder_params(conv_w, conv_b, lin_w, lin_b, *, seq_size, x_dim,
                           y_dim, latent_dim):
    """Hoisted weight re-layout (run once per set of weights, outside the jit)."""
    C = conv_w.shape[0]
    ks, kx, ky = conv_w.shape[2], conv_w.shape[3], conv_w.shape[4]
    nseq, nx, ny = seq_size - ks + 1, x_dim - kx + 1, y_dim - ky + 1
    P = nseq * nx * ny
    K = ks * kx * ky
    Kp = ((K + 127) // 128) * 128        # 675 -> 768: lane-aligned contraction
    Cp = 128                             # lane-pad conv channels 32 -> 128

    # (Kp, Cp) conv weight: taps (ds,di,dj) row-major down the rows, channels
    # across the lanes; zero-padded rows/cols keep results unchanged.
    convw = jnp.pad(conv_w.reshape(C, K).T, ((0, Kp - K), (0, Cp - C)))
    convw = convw.astype(jnp.bfloat16)
    convb = jnp.pad(conv_b.reshape(1, C), ((0, 0), (0, Cp - C)))
    convb = convb.astype(jnp.float32)

    # torch flattens the conv output as (c, p); the fused dot wants rows
    # (p*Cp + c), with the padded channels (c >= C) zero.
    linw = lin_w.reshape(latent_dim, C, P).transpose(2, 1, 0)   # (P, C, L)
    linw = jnp.pad(linw, ((0, 0), (0, Cp - C), (0, 0)))          # (P, Cp, L)
    linw = linw.reshape(P * Cp, latent_dim).astype(jnp.float32)
    linb = lin_b.reshape(1, latent_dim).astype(jnp.float32)
    return convw, convb, linw, linb


# ------------------------------- wrapper -------------------------------------
def encoder_forward(x, convw, convb, linw, linb, *, seq_size, x_dim, y_dim,
                    latent_dim, kernel_size=(3, 15, 15)):
    B = x.shape[0]
    ks, kx, ky = kernel_size
    nseq, nx, ny = seq_size - ks + 1, x_dim - kx + 1, y_dim - ky + 1
    P = nseq * nx * ny
    K = ks * kx * ky
    Kp = convw.shape[0]

    xv = x.reshape(B, seq_size, x_dim, y_dim).astype(jnp.bfloat16)

    # ---- im2col built directly in (b, s, i, j, ds, di, dj) order ----
    # (stack axes chosen so NO transpose is needed before the reshape)
    # a[b, s, ds, x, y]          = xv[b, s + ds, x, y]
    a = jnp.stack([xv[:, s:s + ks] for s in range(nseq)], axis=1)
    # m[b, s, i, ds, di, y]      = a[b, s, ds, i + di, y]
    m = jnp.stack([a[:, :, :, i:i + kx, :] for i in range(nx)], axis=2)
    # c[b, s, i, j, ds, di, dj]  = m[b, s, i, ds, di, j + dj]
    c = jnp.stack([m[..., j:j + ky] for j in range(ny)], axis=3)
    patches = c.reshape(B * P, K)                      # rows b-major, taps row-major
    patches = jnp.pad(patches, ((0, 0), (0, Kp - K)))  # already bf16

    # No grid: everything (< 2 MiB) lives whole in VMEM, no double buffering
    # or per-step pipeline setup.  If batch ever scales up, tile the patch-row
    # dimension with a leading "parallel" grid axis (engages v7x's 2 TCs) and
    # size tiles for the 16/32 MiB scoped-VMEM defaults (v5e/v6e) or set
    # pltpu.CompilerParams(vmem_limit_bytes=...).
    vmem_spec = lambda: pl.BlockSpec(memory_space=pltpu.MemorySpace.VMEM)
    return pl.pallas_call(
        encoder_kernel,
        out_shape=jax.ShapeDtypeStruct((B, latent_dim), jnp.float32),
        in_specs=[vmem_spec() for _ in range(5)],
        out_specs=vmem_spec(),
    )(patches, convw, convb, linw, linb)


# --------------------------- pure-JAX reference -------------------------------
def encoder_reference(x, conv_w, conv_b, lin_w, lin_b, *, seq_size, x_dim,
                      y_dim):
    B = x.shape[0]
    xv = x.reshape(B, 1, seq_size, x_dim, y_dim).astype(jnp.float32)
    y = jax.lax.conv_general_dilated(
        xv, conv_w, window_strides=(1, 1, 1), padding="VALID",
        dimension_numbers=("NCDHW", "OIDHW", "NCDHW"),
        precision=jax.lax.Precision.HIGHEST)
    y = jnp.maximum(y + conv_b.reshape(1, -1, 1, 1, 1), 0.0)
    flat = y.reshape(B, -1)
    return jnp.matmul(flat, lin_w.T,
                      precision=jax.lax.Precision.HIGHEST) + lin_b


# --------------------------------- main ---------------------------------------
if __name__ == "__main__":
    # Module config (small but consistent with the torch module):
    # embed_dim=256 -> x_dim=y_dim=16; kernel=(3,15,15) -> nx=ny=2;
    # seq_size=8 -> nseq=6; hidden_ch=32 -> lin1 in_features = 32*6*2*2 = 768.
    embed_dim = 256
    seq_size = 8
    latent_dim = 32
    hid_ch = 32
    x_dim = 16
    y_dim = embed_dim // x_dim
    ks, kx, ky = 3, 15, 15
    nseq, nx, ny = seq_size - ks + 1, x_dim - kx + 1, y_dim - ky + 1
    in_features = nseq * nx * ny * hid_ch

    batch = 2
    key = jax.random.PRNGKey(0)
    k_x, k_cw, k_cb, k_lw, k_lb = jax.random.split(key, 5)

    x = jax.random.normal(k_x, (batch, seq_size, embed_dim), dtype=jnp.float32)

    # Deterministic synthetic parameters (shapes match nn.Conv3d / nn.Linear).
    conv_w = 0.05 * jax.random.normal(k_cw, (hid_ch, 1, ks, kx, ky),
                                      dtype=jnp.float32)
    conv_b = 0.05 * jax.random.normal(k_cb, (hid_ch,), dtype=jnp.float32)
    lin_w = 0.05 * jax.random.normal(k_lw, (latent_dim, in_features),
                                     dtype=jnp.float32)
    lin_b = 0.05 * jax.random.normal(k_lb, (latent_dim,), dtype=jnp.float32)

    # One-time weight prep (hoisted out of the per-call jit).
    params = prepare_encoder_params(conv_w, conv_b, lin_w, lin_b,
                                    seq_size=seq_size, x_dim=x_dim,
                                    y_dim=y_dim, latent_dim=latent_dim)
    params = jax.block_until_ready(params)

    fwd = jax.jit(functools.partial(encoder_forward, seq_size=seq_size,
                                    x_dim=x_dim, y_dim=y_dim,
                                    latent_dim=latent_dim,
                                    kernel_size=(ks, kx, ky)))
    out = fwd(x, *params)
    out = jax.block_until_ready(out)

    ref = encoder_reference(x, conv_w, conv_b, lin_w, lin_b,
                            seq_size=seq_size, x_dim=x_dim, y_dim=y_dim)
    ref = jax.block_until_ready(ref)

    assert out.shape == (batch, latent_dim)
    assert jnp.allclose(out, ref, atol=2e-2, rtol=2e-2), (
        "mismatch vs reference")
    print("KERNEL_OK")
</pallas_src>

<mosaic_0001>
module attributes {stable_mosaic.version = 11 : i64} {
  func.func @encoder_kernel(%arg0: memref<48x768xbf16, #tpu.memory_space<vmem>>, %arg1: memref<768x128xbf16, #tpu.memory_space<vmem>>, %arg2: memref<1x128xf32, #tpu.memory_space<vmem>>, %arg3: memref<3072x32xf32, #tpu.memory_space<vmem>>, %arg4: memref<1x32xf32, #tpu.memory_space<vmem>>, %arg5: memref<2x32xf32, #tpu.memory_space<vmem>>) attributes {dimension_semantics = [], scalar_prefetch = 0 : i64, scratch_operands = 0 : i64, tpu.core_type = #tpu.core_type<tc>} {
    %c0 = arith.constant 0 : index
    %c0_0 = arith.constant 0 : index
    %0 = vector.load %arg0[%c0, %c0_0] : memref<48x768xbf16, #tpu.memory_space<vmem>>, vector<48x768xbf16>
    %c0_1 = arith.constant 0 : index
    %c0_2 = arith.constant 0 : index
    %1 = vector.load %arg1[%c0_1, %c0_2] : memref<768x128xbf16, #tpu.memory_space<vmem>>, vector<768x128xbf16>
    %cst = arith.constant dense<0.000000e+00> : vector<48x128xf32>
    %2 = tpu.matmul %0, %1, %cst {dimension_numbers = #tpu.dot_dimension_numbers<[1], [0], [0], [1], [0, 0, 1, 1], [], []>} : vector<48x768xbf16>, vector<768x128xbf16>, vector<48x128xf32> -> vector<48x128xf32>
    %c0_3 = arith.constant 0 : index
    %c0_4 = arith.constant 0 : index
    %3 = vector.load %arg2[%c0_3, %c0_4] : memref<1x128xf32, #tpu.memory_space<vmem>>, vector<1x128xf32>
    %4 = vector.broadcast %3 : vector<1x128xf32> to vector<48x128xf32>
    %5 = arith.addf %2, %4 : vector<48x128xf32>
    %cst_5 = arith.constant 0.000000e+00 : f32
    %6 = vector.broadcast %cst_5 : f32 to vector<48x128xf32>
    %7 = arith.maximumf %5, %6 : vector<48x128xf32>
    %8 = vector.shape_cast %7 : vector<48x128xf32> to vector<2x3072xf32>
    %c0_6 = arith.constant 0 : index
    %c0_7 = arith.constant 0 : index
    %9 = vector.load %arg3[%c0_6, %c0_7] : memref<3072x32xf32, #tpu.memory_space<vmem>>, vector<3072x32xf32>
    %cst_8 = arith.constant dense<0.000000e+00> : vector<2x32xf32>
    %10 = tpu.matmul %8, %9, %cst_8 {dimension_numbers = #tpu.dot_dimension_numbers<[1], [0], [0], [1], [0, 0, 1, 1], [], []>} : vector<2x3072xf32>, vector<3072x32xf32>, vector<2x32xf32> -> vector<2x32xf32>
    %c0_9 = arith.constant 0 : index
    %c0_10 = arith.constant 0 : index
    %11 = vector.load %arg4[%c0_9, %c0_10] : memref<1x32xf32, #tpu.memory_space<vmem>>, vector<1x32xf32>
    %12 = vector.broadcast %11 : vector<1x32xf32> to vector<2x32xf32>
    %13 = arith.addf %10, %12 : vector<2x32xf32>
    %c0_11 = arith.constant 0 : index
    %c0_12 = arith.constant 0 : index
    %14 = vector.load %arg5[%c0_11, %c0_12] : memref<2x32xf32, #tpu.memory_space<vmem>>, vector<2x32xf32>
    tpu.vector_store %arg5[%c0_11, %c0_12], %13 {strides = array<i32>} : memref<2x32xf32, #tpu.memory_space<vmem>>, vector<2x32xf32>,
    return
  }
}

</mosaic_0001>

<llo_original>
// kernel: encoder_forward.1
$region0: #{encoder_forward.1}
  #allocation0 [shape = 'u32[]', space=smem, size = 0x4, offset = 0x4, fixed_abs, tag = 'smem constant byte address 0x4 - core index']
  #allocation1 [shape = 'u32[144,128]{1,0:T(1,128)}', space=vmem, size = 0x12000, scoped, tag = 'internal scratch']
  %s0 = inlined_call_operand.vmem [shape: bf16[48,768], index: 0, kind: input, shape index: {}]
  %s1 = inlined_call_operand.vmem [shape: bf16[768,128], index: 1, kind: input, shape index: {}]
  %s2 = inlined_call_operand.vmem [shape: f32[1,128], index: 2, kind: input, shape index: {}]
  %s3 = inlined_call_operand.vmem [shape: f32[3072,32], index: 3, kind: input, shape index: {}]
  %s4 = inlined_call_operand.vmem [shape: f32[1,32], index: 4, kind: input, shape index: {}]
  %s5 = inlined_call_operand.hbm [shape: f32[2,32], index: 5, kind: output, shape index: {}]
  %s6 = sld [smem:[#allocation0]]
  $region30: #{encoder_forward.1} parent=0
    _
  %s8 = ssub.s32 1, %s6
  %s9 = scalar_select 0, %s8, %s6
  $region1: #{encoder_forward.1} parent=0
    #allocation2 [shape = 'u8[1024]{0}', space=vmem, size = 0x400, scoped, tag = 'output window, operand 0, single buffered']
    #allocation3 [shape = 's32[1]{0}', space=sflag, size = 0x4, scoped, tag = 'scoped memory for encoder_forward.1']
    %10 = vsyncpa [#allocation3], 0
    // Predicated region
    $region2: #{encoder_forward.1} parent=1 // pred_check
      _
    $region3: #{encoder_forward.1} parent=1 // pred_check_branch
      %12 = sbr.rel (0) target = $region5
    $region4: #{encoder_forward.1} parent=1 // pred_region
      _
    $region5: #{encoder_forward.1} parent=1 // pred_fallthru
      _
    // Predicated region
    $region6: #{encoder_forward.1} parent=1 // pred_check
      _
    $region7: #{encoder_forward.1} parent=1 // pred_check_branch
      %14 = sbr.rel (0) target = $region9
    $region8: #{encoder_forward.1} parent=1 // pred_region
      _
    $region9: #{encoder_forward.1} parent=1 // pred_fallthru
      _
    // Predicated region
    $region10: #{encoder_forward.1} parent=1 // pred_check
      _
    $region11: #{encoder_forward.1} parent=1 // pred_check_branch
      %16 = sbr.rel (0) target = $region13
    $region12: #{encoder_forward.1} parent=1 // pred_region
      _
    $region13: #{encoder_forward.1} parent=1 // pred_fallthru
      _
    // Predicated region
    $region14: #{encoder_forward.1} parent=1 // pred_check
      _
    $region15: #{encoder_forward.1} parent=1 // pred_check_branch
      %18 = sbr.rel (0) target = $region17
    $region16: #{encoder_forward.1} parent=1 // pred_region
      _
    $region17: #{encoder_forward.1} parent=1 // pred_fallthru
      _
    // Predicated region
    $region18: #{encoder_forward.1} parent=1 // pred_check
      _
    $region19: #{encoder_forward.1} parent=1 // pred_check_branch
      %20 = sbr.rel (0) target = $region21
    $region20: #{encoder_forward.1} parent=1 // pred_region
      _
    $region21: #{encoder_forward.1} parent=1 // pred_fallthru
      _
    %v22 = vld [vmem:[%s0] sm:$0xff]
    %v23 = vld [vmem:[%s0 + $0x8] sm:$0xff]
    %v24 = vld [vmem:[%s0 + $0x10] sm:$0xff]
    %v25 = vld [vmem:[%s0 + $0x18] sm:$0xff]
    %v26 = vld [vmem:[%s0 + $0x20] sm:$0xff]
    %v27 = vld [vmem:[%s0 + $0x28] sm:$0xff]
    %v28 = vld [vmem:[%s0 + $0x30] sm:$0xff]
    %v29 = vld [vmem:[%s0 + $0x38] sm:$0xff]
    %v30 = vld [vmem:[%s0 + $0x40] sm:$0xff]
    %v31 = vld [vmem:[%s0 + $0x48] sm:$0xff]
    %v32 = vld [vmem:[%s0 + $0x50] sm:$0xff]
    %v33 = vld [vmem:[%s0 + $0x58] sm:$0xff]
    %v34 = vld [vmem:[%s0 + $0x60] sm:$0xff]
    %v35 = vld [vmem:[%s0 + $0x68] sm:$0xff]
    %v36 = vld [vmem:[%s0 + $0x70] sm:$0xff]
    %v37 = vld [vmem:[%s0 + $0x78] sm:$0xff]
    %v38 = vld [vmem:[%s0 + $0x80] sm:$0xff]
    %v39 = vld [vmem:[%s0 + $0x88] sm:$0xff]
    %v40 = vld [vmem:[%s1] sm:$0xf]
    %v41 = vld [vmem:[%s1 + $0x4] sm:$0xf]
    %v42 = vld [vmem:[%s1 + $0x8] sm:$0xf]
    %v43 = vld [vmem:[%s1 + $0xc] sm:$0xf]
    %v44 = vld [vmem:[%s1 + $0x10] sm:$0xf]
    %v45 = vld [vmem:[%s1 + $0x14] sm:$0xf]
    %v46 = vld [vmem:[%s1 + $0x18] sm:$0xf]
    %v47 = vld [vmem:[%s1 + $0x1c] sm:$0xf]
    %v48 = vld [vmem:[%s1 + $0x20] sm:$0xf]
    %v49 = vld [vmem:[%s1 + $0x24] sm:$0xf]
    %v50 = vld [vmem:[%s1 + $0x28] sm:$0xf]
    %v51 = vld [vmem:[%s1 + $0x2c] sm:$0xf]
    %v52 = vld [vmem:[%s1 + $0x30] sm:$0xf]
    %v53 = vld [vmem:[%s1 + $0x34] sm:$0xf]
    %v54 = vld [vmem:[%s1 + $0x38] sm:$0xf]
    %v55 = vld [vmem:[%s1 + $0x3c] sm:$0xf]
    %v56 = vld [vmem:[%s1 + $0x40] sm:$0xf]
    %v57 = vld [vmem:[%s1 + $0x44] sm:$0xf]
    %v58 = vld [vmem:[%s1 + $0x48] sm:$0xf]
    %v59 = vld [vmem:[%s1 + $0x4c] sm:$0xf]
    %v60 = vld [vmem:[%s1 + $0x50] sm:$0xf]
    %v61 = vld [vmem:[%s1 + $0x54] sm:$0xf]
    %v62 = vld [vmem:[%s1 + $0x58] sm:$0xf]
    %v63 = vld [vmem:[%s1 + $0x5c] sm:$0xf]
    %v64 = vld [vmem:[%s1 + $0x60] sm:$0xf]
    %v65 = vld [vmem:[%s1 + $0x64] sm:$0xf]
    %v66 = vld [vmem:[%s1 + $0x68] sm:$0xf]
    %v67 = vld [vmem:[%s1 + $0x6c] sm:$0xf]
    %v68 = vld [vmem:[%s1 + $0x70] sm:$0xf]
    %v69 = vld [vmem:[%s1 + $0x74] sm:$0xf]
    %v70 = vld [vmem:[%s1 + $0x78] sm:$0xf]
    %v71 = vld [vmem:[%s1 + $0x7c] sm:$0xf]
    %v72 = vld [vmem:[%s1 + $0x80] sm:$0xf]
    %v73 = vld [vmem:[%s1 + $0x84] sm:$0xf]
    %v74 = vld [vmem:[%s1 + $0x88] sm:$0xf]
    %v75 = vld [vmem:[%s1 + $0x8c] sm:$0xf]
    %v76 = vld [vmem:[%s1 + $0x90] sm:$0xf]
    %v77 = vld [vmem:[%s1 + $0x94] sm:$0xf]
    %v78 = vld [vmem:[%s1 + $0x98] sm:$0xf]
    %v79 = vld [vmem:[%s1 + $0x9c] sm:$0xf]
    %v80 = vld [vmem:[%s1 + $0xa0] sm:$0xf]
    %v81 = vld [vmem:[%s1 + $0xa4] sm:$0xf]
    %v82 = vld [vmem:[%s1 + $0xa8] sm:$0xf]
    %v83 = vld [vmem:[%s1 + $0xac] sm:$0xf]
    %v84 = vld [vmem:[%s1 + $0xb0] sm:$0xf]
    %v85 = vld [vmem:[%s1 + $0xb4] sm:$0xf]
    %v86 = vld [vmem:[%s1 + $0xb8] sm:$0xf]
    %v87 = vld [vmem:[%s1 + $0xbc] sm:$0xf]
    %v88 = vld [vmem:[%s1 + $0xc0] sm:$0xf]
    %v89 = vld [vmem:[%s1 + $0xc4] sm:$0xf]
    %v90 = vld [vmem:[%s1 + $0xc8] sm:$0xf]
    %v91 = vld [vmem:[%s1 + $0xcc] sm:$0xf]
    %v92 = vld [vmem:[%s1 + $0xd0] sm:$0xf]
    %v93 = vld [vmem:[%s1 + $0xd4] sm:$0xf]
    %v94 = vld [vmem:[%s1 + $0xd8] sm:$0xf]
    %v95 = vld [vmem:[%s1 + $0xdc] sm:$0xf]
    %v96 = vld [vmem:[%s1 + $0xe0] sm:$0xf]
    %v97 = vld [vmem:[%s1 + $0xe4] sm:$0xf]
    %v98 = vld [vmem:[%s1 + $0xe8] sm:$0xf]
    %v99 = vld [vmem:[%s1 + $0xec] sm:$0xf]
    %v100 = vld [vmem:[%s1 + $0xf0] sm:$0xf]
    %v101 = vld [vmem:[%s1 + $0xf4] sm:$0xf]
    %v102 = vld [vmem:[%s1 + $0xf8] sm:$0xf]
    %v103 = vld [vmem:[%s1 + $0xfc] sm:$0xf]
    %v104 = vld [vmem:[%s1 + $0x100] sm:$0xf]
    %v105 = vld [vmem:[%s1 + $0x104] sm:$0xf]
    %v106 = vld [vmem:[%s1 + $0x108] sm:$0xf]
    %v107 = vld [vmem:[%s1 + $0x10c] sm:$0xf]
    %v108 = vld [vmem:[%s1 + $0x110] sm:$0xf]
    %v109 = vld [vmem:[%s1 + $0x114] sm:$0xf]
    %v110 = vld [vmem:[%s1 + $0x118] sm:$0xf]
    %v111 = vld [vmem:[%s1 + $0x11c] sm:$0xf]
    %v112 = vld [vmem:[%s1 + $0x120] sm:$0xf]
    %v113 = vld [vmem:[%s1 + $0x124] sm:$0xf]
    %v114 = vld [vmem:[%s1 + $0x128] sm:$0xf]
    %v115 = vld [vmem:[%s1 + $0x12c] sm:$0xf]
    %v116 = vld [vmem:[%s1 + $0x130] sm:$0xf]
    %v117 = vld [vmem:[%s1 + $0x134] sm:$0xf]
    %v118 = vld [vmem:[%s1 + $0x138] sm:$0xf]
    %v119 = vld [vmem:[%s1 + $0x13c] sm:$0xf]
    %v120 = vld [vmem:[%s1 + $0x140] sm:$0xf]
    %v121 = vld [vmem:[%s1 + $0x144] sm:$0xf]
    %v122 = vld [vmem:[%s1 + $0x148] sm:$0xf]
    %v123 = vld [vmem:[%s1 + $0x14c] sm:$0xf]
    %v124 = vld [vmem:[%s1 + $0x150] sm:$0xf]
    %v125 = vld [vmem:[%s1 + $0x154] sm:$0xf]
    %v126 = vld [vmem:[%s1 + $0x158] sm:$0xf]
    %v127 = vld [vmem:[%s1 + $0x15c] sm:$0xf]
    %v128 = vld [vmem:[%s1 + $0x160] sm:$0xf]
    %v129 = vld [vmem:[%s1 + $0x164] sm:$0xf]
    %v130 = vld [vmem:[%s1 + $0x168] sm:$0xf]
    %v131 = vld [vmem:[%s1 + $0x16c] sm:$0xf]
    %v132 = vld [vmem:[%s1 + $0x170] sm:$0xf]
    %v133 = vld [vmem:[%s1 + $0x174] sm:$0xf]
    %v134 = vld [vmem:[%s1 + $0x178] sm:$0xf]
    %v135 = vld [vmem:[%s1 + $0x17c] sm:$0xf]
    %v136 = vld [vmem:[%s2] sm:$0x1]
    %v138 = vlaneseq
    %v139 = vshrl.u32 %v138, 7
    %v140 = vsub.s32 0, %v139
    %v141 = vrot.slane %v136, %v140
    %v161 = vunpack.c.l.b16 %v22
    %v162 = vunpack.c.h.b16 %v22
    %v163 = vunpack.c.l.b16 %v23
    %v164 = vunpack.c.h.b16 %v23
    %v165 = vunpack.c.l.b16 %v24
    %v166 = vunpack.c.h.b16 %v24
    %v167 = vunpack.c.l.b16 %v25
    %v168 = vunpack.c.h.b16 %v25
    %v169 = vunpack.c.l.b16 %v26
    %v170 = vunpack.c.h.b16 %v26
    %v171 = vunpack.c.l.b16 %v27
    %v172 = vunpack.c.h.b16 %v27
    %v173 = vunpack.c.l.b16 %v28
    %v174 = vunpack.c.h.b16 %v28
    %v175 = vunpack.c.l.b16 %v29
    %v176 = vunpack.c.h.b16 %v29
    %v177 = vunpack.c.l.b16 %v30
    %v178 = vunpack.c.h.b16 %v30
    %v179 = vunpack.c.l.b16 %v31
    %v180 = vunpack.c.h.b16 %v31
    %v181 = vunpack.c.l.b16 %v32
    %v182 = vunpack.c.h.b16 %v32
    %v183 = vunpack.c.l.b16 %v33
    %v184 = vunpack.c.h.b16 %v33
    %v185 = vunpack.c.l.b16 %v34
    %v186 = vunpack.c.h.b16 %v34
    %v187 = vunpack.c.l.b16 %v35
    %v188 = vunpack.c.h.b16 %v35
    %v189 = vunpack.c.l.b16 %v36
    %v190 = vunpack.c.h.b16 %v36
    %v191 = vunpack.c.l.b16 %v37
    %v192 = vunpack.c.h.b16 %v37
    %v193 = vunpack.c.l.b16 %v38
    %v194 = vunpack.c.h.b16 %v38
    %v195 = vunpack.c.l.b16 %v39
    %v196 = vunpack.c.h.b16 %v39
    %v197 = vpack.c.b16 %v167, %v161
    %v198 = vpack.c.b16 %v168, %v162
    %v199 = vpack.c.b16 %v169, %v163
    %v200 = vpack.c.b16 %v170, %v164
    %v201 = vpack.c.b16 %v171, %v165
    %v202 = vpack.c.b16 %v172, %v166
    %v203 = vpack.c.b16 %v179, %v173
    %v204 = vpack.c.b16 %v180, %v174
    %v205 = vpack.c.b16 %v181, %v175
    %v206 = vpack.c.b16 %v182, %v176
    %v207 = vpack.c.b16 %v183, %v177
    %v208 = vpack.c.b16 %v184, %v178
    %v209 = vpack.c.b16 %v191, %v185
    %v210 = vpack.c.b16 %v192, %v186
    %v211 = vpack.c.b16 %v193, %v187
    %v212 = vpack.c.b16 %v194, %v188
    %v213 = vpack.c.b16 %v195, %v189
    %v214 = vpack.c.b16 %v196, %v190
    %v329 = vunpack.c.l.b16 %v40
    %v330 = vunpack.c.l.b16 %v41
    %v331 = vunpack.c.l.b16 %v42
    %v332 = vunpack.c.l.b16 %v43
    %v333 = vunpack.c.l.b16 %v44
    %v334 = vunpack.c.l.b16 %v45
    %v335 = vunpack.c.l.b16 %v46
    %v336 = vunpack.c.l.b16 %v47
    %v337 = vunpack.c.l.b16 %v48
    %v338 = vunpack.c.l.b16 %v49
    %v339 = vunpack.c.l.b16 %v50
    %v340 = vunpack.c.l.b16 %v51
    %v341 = vunpack.c.l.b16 %v52
    %v342 = vunpack.c.l.b16 %v53
    %v343 = vunpack.c.l.b16 %v54
    %v344 = vunpack.c.l.b16 %v55
    %v345 = vunpack.c.l.b16 %v56
    %v346 = vunpack.c.l.b16 %v57
    %v347 = vunpack.c.l.b16 %v58
    %v348 = vunpack.c.l.b16 %v59
    %v349 = vunpack.c.l.b16 %v60
    %v350 = vunpack.c.l.b16 %v61
    %v351 = vunpack.c.l.b16 %v62
    %v352 = vunpack.c.l.b16 %v63
    %v353 = vunpack.c.l.b16 %v64
    %v354 = vunpack.c.l.b16 %v65
    %v355 = vunpack.c.l.b16 %v66
    %v356 = vunpack.c.l.b16 %v67
    %v357 = vunpack.c.l.b16 %v68
    %v358 = vunpack.c.l.b16 %v69
    %v359 = vunpack.c.l.b16 %v70
    %v360 = vunpack.c.l.b16 %v71
    %v361 = vunpack.c.l.b16 %v72
    %v362 = vunpack.c.l.b16 %v73
    %v363 = vunpack.c.l.b16 %v74
    %v364 = vunpack.c.l.b16 %v75
    %v365 = vunpack.c.l.b16 %v76
    %v366 = vunpack.c.l.b16 %v77
    %v367 = vunpack.c.l.b16 %v78
    %v368 = vunpack.c.l.b16 %v79
    %v369 = vunpack.c.l.b16 %v80
    %v370 = vunpack.c.l.b16 %v81
    %v371 = vunpack.c.l.b16 %v82
    %v372 = vunpack.c.l.b16 %v83
    %v373 = vunpack.c.l.b16 %v84
    %v374 = vunpack.c.l.b16 %v85
    %v375 = vunpack.c.l.b16 %v86
    %v376 = vunpack.c.l.b16 %v87
    %v377 = vunpack.c.l.b16 %v88
    %v378 = vunpack.c.l.b16 %v89
    %v379 = vunpack.c.l.b16 %v90
    %v380 = vunpack.c.l.b16 %v91
    %v381 = vunpack.c.l.b16 %v92
    %v382 = vunpack.c.l.b16 %v93
    %v383 = vunpack.c.l.b16 %v94
    %v384 = vunpack.c.l.b16 %v95
    %v385 = vunpack.c.l.b16 %v96
    %v386 = vunpack.c.l.b16 %v97
    %v387 = vunpack.c.l.b16 %v98
    %v388 = vunpack.c.l.b16 %v99
    %v389 = vunpack.c.l.b16 %v100
    %v390 = vunpack.c.l.b16 %v101
    %v391 = vunpack.c.l.b16 %v102
    %v392 = vunpack.c.l.b16 %v103
    %v393 = vunpack.c.l.b16 %v104
    %v394 = vunpack.c.l.b16 %v105
    %v395 = vunpack.c.l.b16 %v106
    %v396 = vunpack.c.l.b16 %v107
    %v397 = vunpack.c.l.b16 %v108
    %v398 = vunpack.c.l.b16 %v109
    %v399 = vunpack.c.l.b16 %v110
    %v400 = vunpack.c.l.b16 %v111
    %v401 = vunpack.c.l.b16 %v112
    %v402 = vunpack.c.l.b16 %v113
    %v403 = vunpack.c.l.b16 %v114
    %v404 = vunpack.c.l.b16 %v115
    %v405 = vunpack.c.l.b16 %v116
    %v406 = vunpack.c.l.b16 %v117
    %v407 = vunpack.c.l.b16 %v118
    %v408 = vunpack.c.l.b16 %v119
    %v409 = vunpack.c.l.b16 %v120
    %v410 = vunpack.c.l.b16 %v121
    %v411 = vunpack.c.l.b16 %v122
    %v412 = vunpack.c.l.b16 %v123
    %v413 = vunpack.c.l.b16 %v124
    %v414 = vunpack.c.l.b16 %v125
    %v415 = vunpack.c.l.b16 %v126
    %v416 = vunpack.c.l.b16 %v127
    %v417 = vunpack.c.l.b16 %v128
    %v418 = vunpack.c.l.b16 %v129
    %v419 = vunpack.c.l.b16 %v130
    %v420 = vunpack.c.l.b16 %v131
    %v421 = vunpack.c.l.b16 %v132
    %v422 = vunpack.c.l.b16 %v133
    %v423 = vunpack.c.l.b16 %v134
    %v424 = vunpack.c.l.b16 %v135
    %v425 = vpack.c.b16 %v330, %v329
    %v426 = vpack.c.b16 %v332, %v331
    %v427 = vpack.c.b16 %v334, %v333
    %v428 = vpack.c.b16 %v336, %v335
    %v429 = vpack.c.b16 %v338, %v337
    %v430 = vpack.c.b16 %v340, %v339
    %v431 = vpack.c.b16 %v342, %v341
    %v432 = vpack.c.b16 %v344, %v343
    %v433 = vpack.c.b16 %v346, %v345
    %v434 = vpack.c.b16 %v348, %v347
    %v435 = vpack.c.b16 %v350, %v349
    %v436 = vpack.c.b16 %v352, %v351
    %v437 = vpack.c.b16 %v354, %v353
    %v438 = vpack.c.b16 %v356, %v355
    %v439 = vpack.c.b16 %v358, %v357
    %v440 = vpack.c.b16 %v360, %v359
    %v441 = vpack.c.b16 %v362, %v361
    %v442 = vpack.c.b16 %v364, %v363
    %v443 = vpack.c.b16 %v366, %v365
    %v444 = vpack.c.b16 %v368, %v367
    %v445 = vpack.c.b16 %v370, %v369
    %v446 = vpack.c.b16 %v372, %v371
    %v447 = vpack.c.b16 %v374, %v373
    %v448 = vpack.c.b16 %v376, %v375
    %v449 = vpack.c.b16 %v378, %v377
    %v450 = vpack.c.b16 %v380, %v379
    %v451 = vpack.c.b16 %v382, %v381
    %v452 = vpack.c.b16 %v384, %v383
    %v453 = vpack.c.b16 %v386, %v385
    %v454 = vpack.c.b16 %v388, %v387
    %v455 = vpack.c.b16 %v390, %v389
    %v456 = vpack.c.b16 %v392, %v391
    %v457 = vpack.c.b16 %v394, %v393
    %v458 = vpack.c.b16 %v396, %v395
    %v459 = vpack.c.b16 %v398, %v397
    %v460 = vpack.c.b16 %v400, %v399
    %v461 = vpack.c.b16 %v402, %v401
    %v462 = vpack.c.b16 %v404, %v403
    %v463 = vpack.c.b16 %v406, %v405
    %v464 = vpack.c.b16 %v408, %v407
    %v465 = vpack.c.b16 %v410, %v409
    %v466 = vpack.c.b16 %v412, %v411
    %v467 = vpack.c.b16 %v414, %v413
    %v468 = vpack.c.b16 %v416, %v415
    %v469 = vpack.c.b16 %v418, %v417
    %v470 = vpack.c.b16 %v420, %v419
    %v471 = vpack.c.b16 %v422, %v421
    %v472 = vpack.c.b16 %v424, %v423
    %521 = vmatprep.subr.bf16.mxu0 0
    %522 = vmatpush1.bf16.msra.mxu0 %v425
    %523 = vmatprep.subr.bf16.mxu0 0
    %524 = vmatpush1.bf16.msra.mxu0 %v426
    %525 = vmatprep.subr.bf16.mxu0 0
    %526 = vmatpush1.bf16.msra.mxu0 %v427
    %527 = vmatprep.subr.bf16.mxu0 0
    %528 = vmatpush1.bf16.msra.mxu0 %v428
    %529 = vmatprep.subr.bf16.mxu0 0
    %530 = vmatpush1.bf16.msra.mxu0 %v429
    %531 = vmatprep.subr.bf16.mxu0 0
    %532 = vmatpush1.bf16.msra.mxu0 %v430
    %533 = vmatprep.subr.bf16.mxu0 0
    %534 = vmatpush1.bf16.msra.mxu0 %v431
    %535 = vmatprep.subr.bf16.mxu0 0
    %536 = vmatpush1.bf16.msra.mxu0 %v432
    %537 = vmatprep.subr.bf16.mxu0 0
    %538 = vmatpush1.bf16.msra.mxu0 %v433
    %539 = vmatprep.subr.bf16.mxu0 0
    %540 = vmatpush1.bf16.msra.mxu0 %v434
    %541 = vmatprep.subr.bf16.mxu0 0
    %542 = vmatpush1.bf16.msra.mxu0 %v435
    %543 = vmatprep.subr.bf16.mxu0 0
    %544 = vmatpush1.bf16.msra.mxu0 %v436
    %545 = vmatprep.subr.bf16.mxu0 0
    %546 = vmatpush1.bf16.msra.mxu0 %v437
    %547 = vmatprep.subr.bf16.mxu0 0
    %548 = vmatpush1.bf16.msra.mxu0 %v438
    %549 = vmatprep.subr.bf16.mxu0 0
    %550 = vmatpush1.bf16.msra.mxu0 %v439
    %551 = vmatprep.subr.bf16.mxu0 0
    %552 = vmatpush1.bf16.msra.mxu0 %v440
    %553 = vmatprep.mubr.bf16.mxu0 %v198
    %554 = vmatmul.mubr.bf16.gmra.mrb[0].mxu0 %v197
    %v555 = vpop.f32.mrb[0].mxu0
    %v556 = vadd.f32 %v141, %v555
    %v557 = vpop.f32.mrb[0].mxu0
    %v558 = vpop.f32.mrb[0].mxu0
    %v559 = vadd.f32 %v141, %v558
    %v560 = vpop.f32.mrb[0].mxu0
    %561 = vmatprep.mubr.bf16.mxu0 %v204
    %562 = vmatmul.mubr.bf16.gmra.mrb[0].mxu0 %v203
    %v563 = vpop.f32.mrb[0].mxu0
    %v564 = vadd.f32 %v141, %v563
    %v565 = vpop.f32.mrb[0].mxu0
    %v566 = vpop.f32.mrb[0].mxu0
    %v567 = vadd.f32 %v141, %v566
    %v568 = vpop.f32.mrb[0].mxu0
    %569 = vmatprep.mubr.bf16.mxu0 %v210
    %570 = vmatmul.mubr.bf16.gmra.mrb[0].mxu0 %v209
    %v571 = vpop.f32.mrb[0].mxu0
    %v572 = vadd.f32 %v141, %v571
    %v573 = vpop.f32.mrb[0].mxu0
    %v574 = vpop.f32.mrb[0].mxu0
    %v575 = vadd.f32 %v141, %v574
    %v576 = vpop.f32.mrb[0].mxu0
    %577 = vdwg.mxu0
    %578 = vmatprep.subr.bf16.mxu0 0
    %579 = vmatpush1.bf16.msra.mxu0 %v441
    %580 = vmatprep.subr.bf16.mxu0 0
    %581 = vmatpush1.bf16.msra.mxu0 %v442
    %582 = vmatprep.subr.bf16.mxu0 0
    %583 = vmatpush1.bf16.msra.mxu0 %v443
    %584 = vmatprep.subr.bf16.mxu0 0
    %585 = vmatpush1.bf16.msra.mxu0 %v444
    %586 = vmatprep.subr.bf16.mxu0 0
    %587 = vmatpush1.bf16.msra.mxu0 %v445
    %588 = vmatprep.subr.bf16.mxu0 0
    %589 = vmatpush1.bf16.msra.mxu0 %v446
    %590 = vmatprep.subr.bf16.mxu0 0
    %591 = vmatpush1.bf16.msra.mxu0 %v447
    %592 = vmatprep.subr.bf16.mxu0 0
    %593 = vmatpush1.bf16.msra.mxu0 %v448
    %594 = vmatprep.subr.bf16.mxu0 0
    %595 = vmatpush1.bf16.msra.mxu0 %v449
    %596 = vmatprep.subr.bf16.mxu0 0
    %597 = vmatpush1.bf16.msra.mxu0 %v450
    %598 = vmatprep.subr.bf16.mxu0 0
    %599 = vmatpush1.bf16.msra.mxu0 %v451
    %600 = vmatprep.subr.bf16.mxu0 0
    %601 = vmatpush1.bf16.msra.mxu0 %v452
    %602 = vmatprep.subr.bf16.mxu0 0
    %603 = vmatpush1.bf16.msra.mxu0 %v453
    %604 = vmatprep.subr.bf16.mxu0 0
    %605 = vmatpush1.bf16.msra.mxu0 %v454
    %606 = vmatprep.subr.bf16.mxu0 0
    %607 = vmatpush1.bf16.msra.mxu0 %v455
    %608 = vmatprep.subr.bf16.mxu0 0
    %609 = vmatpush1.bf16.msra.mxu0 %v456
    %610 = vmatprep.mubr.bf16.mxu0 %v200
    %611 = vmatmul.mubr.bf16.gmra.mrb[0].mxu0 %v199
    %v612 = vpop.f32.mrb[0].mxu0
    %v613 = vadd.f32 %v556, %v612
    %v614 = vpop.f32.mrb[0].mxu0
    %v615 = vpop.f32.mrb[0].mxu0
    %v616 = vadd.f32 %v559, %v615
    %v617 = vpop.f32.mrb[0].mxu0
    %618 = vmatprep.mubr.bf16.mxu0 %v206
    %619 = vmatmul.mubr.bf16.gmra.mrb[0].mxu0 %v205
    %v620 = vpop.f32.mrb[0].mxu0
    %v621 = vadd.f32 %v564, %v620
    %v622 = vpop.f32.mrb[0].mxu0
    %v623 = vpop.f32.mrb[0].mxu0
    %v624 = vadd.f32 %v567, %v623
    %v625 = vpop.f32.mrb[0].mxu0
    %626 = vmatprep.mubr.bf16.mxu0 %v212
    %627 = vmatmul.mubr.bf16.gmra.mrb[0].mxu0 %v211
    %v628 = vpop.f32.mrb[0].mxu0
    %v629 = vadd.f32 %v572, %v628
    %v630 = vpop.f32.mrb[0].mxu0
    %v631 = vpop.f32.mrb[0].mxu0
    %v632 = vadd.f32 %v575, %v631
    %v633 = vpop.f32.mrb[0].mxu0
    %634 = vdwg.mxu0
    %635 = vmatprep.subr.bf16.mxu0 0
    %636 = vmatpush1.bf16.msra.mxu0 %v457
    %637 = vmatprep.subr.bf16.mxu0 0
    %638 = vmatpush1.bf16.msra.mxu0 %v458
    %639 = vmatprep.subr.bf16.mxu0 0
    %640 = vmatpush1.bf16.msra.mxu0 %v459
    %641 = vmatprep.subr.bf16.mxu0 0
    %642 = vmatpush1.bf16.msra.mxu0 %v460
    %643 = vmatprep.subr.bf16.mxu0 0
    %644 = vmatpush1.bf16.msra.mxu0 %v461
    %645 = vmatprep.subr.bf16.mxu0 0
    %646 = vmatpush1.bf16.msra.mxu0 %v462
    %647 = vmatprep.subr.bf16.mxu0 0
    %648 = vmatpush1.bf16.msra.mxu0 %v463
    %649 = vmatprep.subr.bf16.mxu0 0
    %650 = vmatpush1.bf16.msra.mxu0 %v464
    %651 = vmatprep.subr.bf16.mxu0 0
    %652 = vmatpush1.bf16.msra.mxu0 %v465
    %653 = vmatprep.subr.bf16.mxu0 0
    %654 = vmatpush1.bf16.msra.mxu0 %v466
    %655 = vmatprep.subr.bf16.mxu0 0
    %656 = vmatpush1.bf16.msra.mxu0 %v467
    %657 = vmatprep.subr.bf16.mxu0 0
    %658 = vmatpush1.bf16.msra.mxu0 %v468
    %659 = vmatprep.subr.bf16.mxu0 0
    %660 = vmatpush1.bf16.msra.mxu0 %v469
    %661 = vmatprep.subr.bf16.mxu0 0
    %662 = vmatpush1.bf16.msra.mxu0 %v470
    %663 = vmatprep.subr.bf16.mxu0 0
    %664 = vmatpush1.bf16.msra.mxu0 %v471
    %665 = vmatprep.subr.bf16.mxu0 0
    %666 = vmatpush1.bf16.msra.mxu0 %v472
    %667 = vmatprep.mubr.bf16.mxu0 %v202
    %668 = vmatmul.mubr.bf16.gmra.mrb[0].mxu0 %v201
    %v669 = vpop.f32.mrb[0].mxu0
    %v670 = vadd.f32 %v613, %v669
    %v671 = vpop.f32.mrb[0].mxu0
    %v672 = vpop.f32.mrb[0].mxu0
    %v673 = vadd.f32 %v616, %v672
    %v674 = vpop.f32.mrb[0].mxu0
    %675 = vmatprep.mubr.bf16.mxu0 %v208
    %676 = vmatmul.mubr.bf16.gmra.mrb[0].mxu0 %v207
    %v677 = vpop.f32.mrb[0].mxu0
    %v678 = vadd.f32 %v621, %v677
    %v679 = vpop.f32.mrb[0].mxu0
    %v680 = vpop.f32.mrb[0].mxu0
    %v681 = vadd.f32 %v624, %v680
    %v682 = vpop.f32.mrb[0].mxu0
    %683 = vmatprep.mubr.bf16.mxu0 %v214
    %684 = vmatmul.mubr.bf16.gmra.mrb[0].mxu0 %v213
    %v685 = vpop.f32.mrb[0].mxu0
    %v686 = vadd.f32 %v629, %v685
    %v687 = vpop.f32.mrb[0].mxu0
    %v688 = vpop.f32.mrb[0].mxu0
    %v689 = vadd.f32 %v632, %v688
    %v690 = vpop.f32.mrb[0].mxu0
    %691 = vdwg.mxu0
    %v692 = vmax.f32 %v670, 0.0
    %v693 = vmax.f32 %v673, 0.0
    %v694 = vmax.f32 %v678, 0.0
    %v695 = vmax.f32 %v681, 0.0
    %v696 = vmax.f32 %v686, 0.0
    %v697 = vmax.f32 %v689, 0.0
    %v698 = vld [vmem:[%s3] sm:$0xff]
    %v699 = vld [vmem:[%s3 + $0x8] sm:$0xff]
    %v700 = vld [vmem:[%s3 + $0x10] sm:$0xff]
    %v701 = vld [vmem:[%s3 + $0x18] sm:$0xff]
    %v702 = vld [vmem:[%s3 + $0x20] sm:$0xff]
    %v703 = vld [vmem:[%s3 + $0x28] sm:$0xff]
    %v704 = vld [vmem:[%s3 + $0x30] sm:$0xff]
    %v705 = vld [vmem:[%s3 + $0x38] sm:$0xff]
    %v706 = vld [vmem:[%s3 + $0x40] sm:$0xff]
    %v707 = vld [vmem:[%s3 + $0x48] sm:$0xff]
    %v708 = vld [vmem:[%s3 + $0x50] sm:$0xff]
    %v709 = vld [vmem:[%s3 + $0x58] sm:$0xff]
    %v710 = vld [vmem:[%s3 + $0x60] sm:$0xff]
    %v711 = vld [vmem:[%s3 + $0x68] sm:$0xff]
    %v712 = vld [vmem:[%s3 + $0x70] sm:$0xff]
    %v713 = vld [vmem:[%s3 + $0x78] sm:$0xff]
    %v714 = vld [vmem:[%s3 + $0x80] sm:$0xff]
    %v715 = vld [vmem:[%s3 + $0x88] sm:$0xff]
    %v716 = vld [vmem:[%s3 + $0x90] sm:$0xff]
    %v717 = vld [vmem:[%s3 + $0x98] sm:$0xff]
    %v718 = vld [vmem:[%s3 + $0xa0] sm:$0xff]
    %v719 = vld [vmem:[%s3 + $0xa8] sm:$0xff]
    %v720 = vld [vmem:[%s3 + $0xb0] sm:$0xff]
    %v721 = vld [vmem:[%s3 + $0xb8] sm:$0xff]
    %v722 = vld [vmem:[%s3 + $0xc0] sm:$0xff]
    %v723 = vld [vmem:[%s3 + $0xc8] sm:$0xff]
    %v724 = vld [vmem:[%s3 + $0xd0] sm:$0xff]
    %v725 = vld [vmem:[%s3 + $0xd8] sm:$0xff]
    %v726 = vld [vmem:[%s3 + $0xe0] sm:$0xff]
    %v727 = vld [vmem:[%s3 + $0xe8] sm:$0xff]
    %v728 = vld [vmem:[%s3 + $0xf0] sm:$0xff]
    %v729 = vld [vmem:[%s3 + $0xf8] sm:$0xff]
    %v730 = vld [vmem:[%s3 + $0x100] sm:$0xff]
    %v731 = vld [vmem:[%s3 + $0x108] sm:$0xff]
    %v732 = vld [vmem:[%s3 + $0x110] sm:$0xff]
    %v733 = vld [vmem:[%s3 + $0x118] sm:$0xff]
    %v734 = vld [vmem:[%s3 + $0x120] sm:$0xff]
    %v735 = vld [vmem:[%s3 + $0x128] sm:$0xff]
    %v736 = vld [vmem:[%s3 + $0x130] sm:$0xff]
    %v737 = vld [vmem:[%s3 + $0x138] sm:$0xff]
    %v738 = vld [vmem:[%s3 + $0x140] sm:$0xff]
    %v739 = vld [vmem:[%s3 + $0x148] sm:$0xff]
    %v740 = vld [vmem:[%s3 + $0x150] sm:$0xff]
    %v741 = vld [vmem:[%s3 + $0x158] sm:$0xff]
    %v742 = vld [vmem:[%s3 + $0x160] sm:$0xff]
    %v743 = vld [vmem:[%s3 + $0x168] sm:$0xff]
    %v744 = vld [vmem:[%s3 + $0x170] sm:$0xff]
    %v745 = vld [vmem:[%s3 + $0x178] sm:$0xff]
    %v746 = vld [vmem:[%s3 + $0x180] sm:$0xff]
    %v747 = vld [vmem:[%s3 + $0x188] sm:$0xff]
    %v748 = vld [vmem:[%s3 + $0x190] sm:$0xff]
    %v749 = vld [vmem:[%s3 + $0x198] sm:$0xff]
    %v750 = vld [vmem:[%s3 + $0x1a0] sm:$0xff]
    %v751 = vld [vmem:[%s3 + $0x1a8] sm:$0xff]
    %v752 = vld [vmem:[%s3 + $0x1b0] sm:$0xff]
    %v753 = vld [vmem:[%s3 + $0x1b8] sm:$0xff]
    %v754 = vld [vmem:[%s3 + $0x1c0] sm:$0xff]
    %v755 = vld [vmem:[%s3 + $0x1c8] sm:$0xff]
    %v756 = vld [vmem:[%s3 + $0x1d0] sm:$0xff]
    %v757 = vld [vmem:[%s3 + $0x1d8] sm:$0xff]
    %v758 = vld [vmem:[%s3 + $0x1e0] sm:$0xff]
    %v759 = vld [vmem:[%s3 + $0x1e8] sm:$0xff]
    %v760 = vld [vmem:[%s3 + $0x1f0] sm:$0xff]
    %v761 = vld [vmem:[%s3 + $0x1f8] sm:$0xff]
    %v762 = vld [vmem:[%s3 + $0x200] sm:$0xff]
    %v763 = vld [vmem:[%s3 + $0x208] sm:$0xff]
    %v764 = vld [vmem:[%s3 + $0x210] sm:$0xff]
    %v765 = vld [vmem:[%s3 + $0x218] sm:$0xff]
    %v766 = vld [vmem:[%s3 + $0x220] sm:$0xff]
    %v767 = vld [vmem:[%s3 + $0x228] sm:$0xff]
    %v768 = vld [vmem:[%s3 + $0x230] sm:$0xff]
    %v769 = vld [vmem:[%s3 + $0x238] sm:$0xff]
    %v770 = vld [vmem:[%s3 + $0x240] sm:$0xff]
    %v771 = vld [vmem:[%s3 + $0x248] sm:$0xff]
    %v772 = vld [vmem:[%s3 + $0x250] sm:$0xff]
    %v773 = vld [vmem:[%s3 + $0x258] sm:$0xff]
    %v774 = vld [vmem:[%s3 + $0x260] sm:$0xff]
    %v775 = vld [vmem:[%s3 + $0x268] sm:$0xff]
    %v776 = vld [vmem:[%s3 + $0x270] sm:$0xff]
    %v777 = vld [vmem:[%s3 + $0x278] sm:$0xff]
    %v778 = vld [vmem:[%s3 + $0x280] sm:$0xff]
    %v779 = vld [vmem:[%s3 + $0x288] sm:$0xff]
    %v780 = vld [vmem:[%s3 + $0x290] sm:$0xff]
    %v781 = vld [vmem:[%s3 + $0x298] sm:$0xff]
    %v782 = vld [vmem:[%s3 + $0x2a0] sm:$0xff]
    %v783 = vld [vmem:[%s3 + $0x2a8] sm:$0xff]
    %v784 = vld [vmem:[%s3 + $0x2b0] sm:$0xff]
    %v785 = vld [vmem:[%s3 + $0x2b8] sm:$0xff]
    %v786 = vld [vmem:[%s3 + $0x2c0] sm:$0xff]
    %v787 = vld [vmem:[%s3 + $0x2c8] sm:$0xff]
    %v788 = vld [vmem:[%s3 + $0x2d0] sm:$0xff]
    %v789 = vld [vmem:[%s3 + $0x2d8] sm:$0xff]
    %v790 = vld [vmem:[%s3 + $0x2e0] sm:$0xff]
    %v791 = vld [vmem:[%s3 + $0x2e8] sm:$0xff]
    %v792 = vld [vmem:[%s3 + $0x2f0] sm:$0xff]
    %v793 = vld [vmem:[%s3 + $0x2f8] sm:$0xff]
    %v794 = vld [vmem:[%s3 + $0x300] sm:$0xff]
    %v795 = vld [vmem:[%s3 + $0x308] sm:$0xff]
    %v796 = vld [vmem:[%s3 + $0x310] sm:$0xff]
    %v797 = vld [vmem:[%s3 + $0x318] sm:$0xff]
    %v798 = vld [vmem:[%s3 + $0x320] sm:$0xff]
    %v799 = vld [vmem:[%s3 + $0x328] sm:$0xff]
    %v800 = vld [vmem:[%s3 + $0x330] sm:$0xff]
    %v801 = vld [vmem:[%s3 + $0x338] sm:$0xff]
    %v802 = vld [vmem:[%s3 + $0x340] sm:$0xff]
    %v803 = vld [vmem:[%s3 + $0x348] sm:$0xff]
    %v804 = vld [vmem:[%s3 + $0x350] sm:$0xff]
    %v805 = vld [vmem:[%s3 + $0x358] sm:$0xff]
    %v806 = vld [vmem:[%s3 + $0x360] sm:$0xff]
    %v807 = vld [vmem:[%s3 + $0x368] sm:$0xff]
    %v808 = vld [vmem:[%s3 + $0x370] sm:$0xff]
    %v809 = vld [vmem:[%s3 + $0x378] sm:$0xff]
    %v810 = vld [vmem:[%s3 + $0x380] sm:$0xff]
    %v811 = vld [vmem:[%s3 + $0x388] sm:$0xff]
    %v812 = vld [vmem:[%s3 + $0x390] sm:$0xff]
    %v813 = vld [vmem:[%s3 + $0x398] sm:$0xff]
    %v814 = vld [vmem:[%s3 + $0x3a0] sm:$0xff]
    %v815 = vld [vmem:[%s3 + $0x3a8] sm:$0xff]
    %v816 = vld [vmem:[%s3 + $0x3b0] sm:$0xff]
    %v817 = vld [vmem:[%s3 + $0x3b8] sm:$0xff]
    %v818 = vld [vmem:[%s3 + $0x3c0] sm:$0xff]
    %v819 = vld [vmem:[%s3 + $0x3c8] sm:$0xff]
    %v820 = vld [vmem:[%s3 + $0x3d0] sm:$0xff]
    %v821 = vld [vmem:[%s3 + $0x3d8] sm:$0xff]
    %v822 = vld [vmem:[%s3 + $0x3e0] sm:$0xff]
    %v823 = vld [vmem:[%s3 + $0x3e8] sm:$0xff]
    %v824 = vld [vmem:[%s3 + $0x3f0] sm:$0xff]
    %v825 = vld [vmem:[%s3 + $0x3f8] sm:$0xff]
    %v826 = vld [vmem:[%s3 + $0x400] sm:$0xff]
    %v827 = vld [vmem:[%s3 + $0x408] sm:$0xff]
    %v828 = vld [vmem:[%s3 + $0x410] sm:$0xff]
    %v829 = vld [vmem:[%s3 + $0x418] sm:$0xff]
    %v830 = vld [vmem:[%s3 + $0x420] sm:$0xff]
    %v831 = vld [vmem:[%s3 + $0x428] sm:$0xff]
    %v832 = vld [vmem:[%s3 + $0x430] sm:$0xff]
    %v833 = vld [vmem:[%s3 + $0x438] sm:$0xff]
    %v834 = vld [vmem:[%s3 + $0x440] sm:$0xff]
    %v835 = vld [vmem:[%s3 + $0x448] sm:$0xff]
    %v836 = vld [vmem:[%s3 + $0x450] sm:$0xff]
    %v837 = vld [vmem:[%s3 + $0x458] sm:$0xff]
    %v838 = vld [vmem:[%s3 + $0x460] sm:$0xff]
    %v839 = vld [vmem:[%s3 + $0x468] sm:$0xff]
    %v840 = vld [vmem:[%s3 + $0x470] sm:$0xff]
    %v841 = vld [vmem:[%s3 + $0x478] sm:$0xff]
    %v842 = vld [vmem:[%s3 + $0x480] sm:$0xff]
    %v843 = vld [vmem:[%s3 + $0x488] sm:$0xff]
    %v844 = vld [vmem:[%s3 + $0x490] sm:$0xff]
    %v845 = vld [vmem:[%s3 + $0x498] sm:$0xff]
    %v846 = vld [vmem:[%s3 + $0x4a0] sm:$0xff]
    %v847 = vld [vmem:[%s3 + $0x4a8] sm:$0xff]
    %v848 = vld [vmem:[%s3 + $0x4b0] sm:$0xff]
    %v849 = vld [vmem:[%s3 + $0x4b8] sm:$0xff]
    %v850 = vld [vmem:[%s3 + $0x4c0] sm:$0xff]
    %v851 = vld [vmem:[%s3 + $0x4c8] sm:$0xff]
    %v852 = vld [vmem:[%s3 + $0x4d0] sm:$0xff]
    %v853 = vld [vmem:[%s3 + $0x4d8] sm:$0xff]
    %v854 = vld [vmem:[%s3 + $0x4e0] sm:$0xff]
    %v855 = vld [vmem:[%s3 + $0x4e8] sm:$0xff]
    %v856 = vld [vmem:[%s3 + $0x4f0] sm:$0xff]
    %v857 = vld [vmem:[%s3 + $0x4f8] sm:$0xff]
    %v858 = vld [vmem:[%s3 + $0x500] sm:$0xff]
    %v859 = vld [vmem:[%s3 + $0x508] sm:$0xff]
    %v860 = vld [vmem:[%s3 + $0x510] sm:$0xff]
    %v861 = vld [vmem:[%s3 + $0x518] sm:$0xff]
    %v862 = vld [vmem:[%s3 + $0x520] sm:$0xff]
    %v863 = vld [vmem:[%s3 + $0x528] sm:$0xff]
    %v864 = vld [vmem:[%s3 + $0x530] sm:$0xff]
    %v865 = vld [vmem:[%s3 + $0x538] sm:$0xff]
    %v866 = vld [vmem:[%s3 + $0x540] sm:$0xff]
    %v867 = vld [vmem:[%s3 + $0x548] sm:$0xff]
    %v868 = vld [vmem:[%s3 + $0x550] sm:$0xff]
    %v869 = vld [vmem:[%s3 + $0x558] sm:$0xff]
    %v870 = vld [vmem:[%s3 + $0x560] sm:$0xff]
    %v871 = vld [vmem:[%s3 + $0x568] sm:$0xff]
    %v872 = vld [vmem:[%s3 + $0x570] sm:$0xff]
    %v873 = vld [vmem:[%s3 + $0x578] sm:$0xff]
    %v874 = vld [vmem:[%s3 + $0x580] sm:$0xff]
    %v875 = vld [vmem:[%s3 + $0x588] sm:$0xff]
    %v876 = vld [vmem:[%s3 + $0x590] sm:$0xff]
    %v877 = vld [vmem:[%s3 + $0x598] sm:$0xff]
    %v878 = vld [vmem:[%s3 + $0x5a0] sm:$0xff]
    %v879 = vld [vmem:[%s3 + $0x5a8] sm:$0xff]
    %v880 = vld [vmem:[%s3 + $0x5b0] sm:$0xff]
    %v881 = vld [vmem:[%s3 + $0x5b8] sm:$0xff]
    %v882 = vld [vmem:[%s3 + $0x5c0] sm:$0xff]
    %v883 = vld [vmem:[%s3 + $0x5c8] sm:$0xff]
    %v884 = vld [vmem:[%s3 + $0x5d0] sm:$0xff]
    %v885 = vld [vmem:[%s3 + $0x5d8] sm:$0xff]
    %v886 = vld [vmem:[%s3 + $0x5e0] sm:$0xff]
    %v887 = vld [vmem:[%s3 + $0x5e8] sm:$0xff]
    %v888 = vld [vmem:[%s3 + $0x5f0] sm:$0xff]
    %v889 = vld [vmem:[%s3 + $0x5f8] sm:$0xff]
    %v890 = vld [vmem:[%s3 + $0x600] sm:$0xff]
    %v891 = vld [vmem:[%s3 + $0x608] sm:$0xff]
    %v892 = vld [vmem:[%s3 + $0x610] sm:$0xff]
    %v893 = vld [vmem:[%s3 + $0x618] sm:$0xff]
    %v894 = vld [vmem:[%s3 + $0x620] sm:$0xff]
    %v895 = vld [vmem:[%s3 + $0x628] sm:$0xff]
    %v896 = vld [vmem:[%s3 + $0x630] sm:$0xff]
    %v897 = vld [vmem:[%s3 + $0x638] sm:$0xff]
    %v898 = vld [vmem:[%s3 + $0x640] sm:$0xff]
    %v899 = vld [vmem:[%s3 + $0x648] sm:$0xff]
    %v900 = vld [vmem:[%s3 + $0x650] sm:$0xff]
    %v901 = vld [vmem:[%s3 + $0x658] sm:$0xff]
    %v902 = vld [vmem:[%s3 + $0x660] sm:$0xff]
    %v903 = vld [vmem:[%s3 + $0x668] sm:$0xff]
    %v904 = vld [vmem:[%s3 + $0x670] sm:$0xff]
    %v905 = vld [vmem:[%s3 + $0x678] sm:$0xff]
    %v906 = vld [vmem:[%s3 + $0x680] sm:$0xff]
    %v907 = vld [vmem:[%s3 + $0x688] sm:$0xff]
    %v908 = vld [vmem:[%s3 + $0x690] sm:$0xff]
    %v909 = vld [vmem:[%s3 + $0x698] sm:$0xff]
    %v910 = vld [vmem:[%s3 + $0x6a0] sm:$0xff]
    %v911 = vld [vmem:[%s3 + $0x6a8] sm:$0xff]
    %v912 = vld [vmem:[%s3 + $0x6b0] sm:$0xff]
    %v913 = vld [vmem:[%s3 + $0x6b8] sm:$0xff]
    %v914 = vld [vmem:[%s3 + $0x6c0] sm:$0xff]
    %v915 = vld [vmem:[%s3 + $0x6c8] sm:$0xff]
    %v916 = vld [vmem:[%s3 + $0x6d0] sm:$0xff]
    %v917 = vld [vmem:[%s3 + $0x6d8] sm:$0xff]
    %v918 = vld [vmem:[%s3 + $0x6e0] sm:$0xff]
    %v919 = vld [vmem:[%s3 + $0x6e8] sm:$0xff]
    %v920 = vld [vmem:[%s3 + $0x6f0] sm:$0xff]
    %v921 = vld [vmem:[%s3 + $0x6f8] sm:$0xff]
    %v922 = vld [vmem:[%s3 + $0x700] sm:$0xff]
    %v923 = vld [vmem:[%s3 + $0x708] sm:$0xff]
    %v924 = vld [vmem:[%s3 + $0x710] sm:$0xff]
    %v925 = vld [vmem:[%s3 + $0x718] sm:$0xff]
    %v926 = vld [vmem:[%s3 + $0x720] sm:$0xff]
    %v927 = vld [vmem:[%s3 + $0x728] sm:$0xff]
    %v928 = vld [vmem:[%s3 + $0x730] sm:$0xff]
    %v929 = vld [vmem:[%s3 + $0x738] sm:$0xff]
    %v930 = vld [vmem:[%s3 + $0x740] sm:$0xff]
    %v931 = vld [vmem:[%s3 + $0x748] sm:$0xff]
    %v932 = vld [vmem:[%s3 + $0x750] sm:$0xff]
    %v933 = vld [vmem:[%s3 + $0x758] sm:$0xff]
    %v934 = vld [vmem:[%s3 + $0x760] sm:$0xff]
    %v935 = vld [vmem:[%s3 + $0x768] sm:$0xff]
    %v936 = vld [vmem:[%s3 + $0x770] sm:$0xff]
    %v937 = vld [vmem:[%s3 + $0x778] sm:$0xff]
    %v938 = vld [vmem:[%s3 + $0x780] sm:$0xff]
    %v939 = vld [vmem:[%s3 + $0x788] sm:$0xff]
    %v940 = vld [vmem:[%s3 + $0x790] sm:$0xff]
    %v941 = vld [vmem:[%s3 + $0x798] sm:$0xff]
    %v942 = vld [vmem:[%s3 + $0x7a0] sm:$0xff]
    %v943 = vld [vmem:[%s3 + $0x7a8] sm:$0xff]
    %v944 = vld [vmem:[%s3 + $0x7b0] sm:$0xff]
    %v945 = vld [vmem:[%s3 + $0x7b8] sm:$0xff]
    %v946 = vld [vmem:[%s3 + $0x7c0] sm:$0xff]
    %v947 = vld [vmem:[%s3 + $0x7c8] sm:$0xff]
    %v948 = vld [vmem:[%s3 + $0x7d0] sm:$0xff]
    %v949 = vld [vmem:[%s3 + $0x7d8] sm:$0xff]
    %v950 = vld [vmem:[%s3 + $0x7e0] sm:$0xff]
    %v951 = vld [vmem:[%s3 + $0x7e8] sm:$0xff]
    %v952 = vld [vmem:[%s3 + $0x7f0] sm:$0xff]
    %v953 = vld [vmem:[%s3 + $0x7f8] sm:$0xff]
    %v954 = vld [vmem:[%s3 + $0x800] sm:$0xff]
    %v955 = vld [vmem:[%s3 + $0x808] sm:$0xff]
    %v956 = vld [vmem:[%s3 + $0x810] sm:$0xff]
    %v957 = vld [vmem:[%s3 + $0x818] sm:$0xff]
    %v958 = vld [vmem:[%s3 + $0x820] sm:$0xff]
    %v959 = vld [vmem:[%s3 + $0x828] sm:$0xff]
    %v960 = vld [vmem:[%s3 + $0x830] sm:$0xff]
    %v961 = vld [vmem:[%s3 + $0x838] sm:$0xff]
    %v962 = vld [vmem:[%s3 + $0x840] sm:$0xff]
    %v963 = vld [vmem:[%s3 + $0x848] sm:$0xff]
    %v964 = vld [vmem:[%s3 + $0x850] sm:$0xff]
    %v965 = vld [vmem:[%s3 + $0x858] sm:$0xff]
    %v966 = vld [vmem:[%s3 + $0x860] sm:$0xff]
    %v967 = vld [vmem:[%s3 + $0x868] sm:$0xff]
    %v968 = vld [vmem:[%s3 + $0x870] sm:$0xff]
    %v969 = vld [vmem:[%s3 + $0x878] sm:$0xff]
    %v970 = vld [vmem:[%s3 + $0x880] sm:$0xff]
    %v971 = vld [vmem:[%s3 + $0x888] sm:$0xff]
    %v972 = vld [vmem:[%s3 + $0x890] sm:$0xff]
    %v973 = vld [vmem:[%s3 + $0x898] sm:$0xff]
    %v974 = vld [vmem:[%s3 + $0x8a0] sm:$0xff]
    %v975 = vld [vmem:[%s3 + $0x8a8] sm:$0xff]
    %v976 = vld [vmem:[%s3 + $0x8b0] sm:$0xff]
    %v977 = vld [vmem:[%s3 + $0x8b8] sm:$0xff]
    %v978 = vld [vmem:[%s3 + $0x8c0] sm:$0xff]
    %v979 = vld [vmem:[%s3 + $0x8c8] sm:$0xff]
    %v980 = vld [vmem:[%s3 + $0x8d0] sm:$0xff]
    %v981 = vld [vmem:[%s3 + $0x8d8] sm:$0xff]
    %v982 = vld [vmem:[%s3 + $0x8e0] sm:$0xff]
    %v983 = vld [vmem:[%s3 + $0x8e8] sm:$0xff]
    %v984 = vld [vmem:[%s3 + $0x8f0] sm:$0xff]
    %v985 = vld [vmem:[%s3 + $0x8f8] sm:$0xff]
    %v986 = vld [vmem:[%s3 + $0x900] sm:$0xff]
    %v987 = vld [vmem:[%s3 + $0x908] sm:$0xff]
    %v988 = vld [vmem:[%s3 + $0x910] sm:$0xff]
    %v989 = vld [vmem:[%s3 + $0x918] sm:$0xff]
    %v990 = vld [vmem:[%s3 + $0x920] sm:$0xff]
    %v991 = vld [vmem:[%s3 + $0x928] sm:$0xff]
    %v992 = vld [vmem:[%s3 + $0x930] sm:$0xff]
    %v993 = vld [vmem:[%s3 + $0x938] sm:$0xff]
    %v994 = vld [vmem:[%s3 + $0x940] sm:$0xff]
    %v995 = vld [vmem:[%s3 + $0x948] sm:$0xff]
    %v996 = vld [vmem:[%s3 + $0x950] sm:$0xff]
    %v997 = vld [vmem:[%s3 + $0x958] sm:$0xff]
    %v998 = vld [vmem:[%s3 + $0x960] sm:$0xff]
    %v999 = vld [vmem:[%s3 + $0x968] sm:$0xff]
    %v1000 = vld [vmem:[%s3 + $0x970] sm:$0xff]
    %v1001 = vld [vmem:[%s3 + $0x978] sm:$0xff]
    %v1002 = vld [vmem:[%s3 + $0x980] sm:$0xff]
    %v1003 = vld [vmem:[%s3 + $0x988] sm:$0xff]
    %v1004 = vld [vmem:[%s3 + $0x990] sm:$0xff]
    %v1005 = vld [vmem:[%s3 + $0x998] sm:$0xff]
    %v1006 = vld [vmem:[%s3 + $0x9a0] sm:$0xff]
    %v1007 = vld [vmem:[%s3 + $0x9a8] sm:$0xff]
    %v1008 = vld [vmem:[%s3 + $0x9b0] sm:$0xff]
    %v1009 = vld [vmem:[%s3 + $0x9b8] sm:$0xff]
    %v1010 = vld [vmem:[%s3 + $0x9c0] sm:$0xff]
    %v1011 = vld [vmem:[%s3 + $0x9c8] sm:$0xff]
    %v1012 = vld [vmem:[%s3 + $0x9d0] sm:$0xff]
    %v1013 = vld [vmem:[%s3 + $0x9d8] sm:$0xff]
    %v1014 = vld [vmem:[%s3 + $0x9e0] sm:$0xff]
    %v1015 = vld [vmem:[%s3 + $0x9e8] sm:$0xff]
    %v1016 = vld [vmem:[%s3 + $0x9f0] sm:$0xff]
    %v1017 = vld [vmem:[%s3 + $0x9f8] sm:$0xff]
    %v1018 = vld [vmem:[%s3 + $0xa00] sm:$0xff]
    %v1019 = vld [vmem:[%s3 + $0xa08] sm:$0xff]
    %v1020 = vld [vmem:[%s3 + $0xa10] sm:$0xff]
    %v1021 = vld [vmem:[%s3 + $0xa18] sm:$0xff]
    %v1022 = vld [vmem:[%s3 + $0xa20] sm:$0xff]
    %v1023 = vld [vmem:[%s3 + $0xa28] sm:$0xff]
    %v1024 = vld [vmem:[%s3 + $0xa30] sm:$0xff]
    %v1025 = vld [vmem:[%s3 + $0xa38] sm:$0xff]
    %v1026 = vld [vmem:[%s3 + $0xa40] sm:$0xff]
    %v1027 = vld [vmem:[%s3 + $0xa48] sm:$0xff]
    %v1028 = vld [vmem:[%s3 + $0xa50] sm:$0xff]
    %v1029 = vld [vmem:[%s3 + $0xa58] sm:$0xff]
    %v1030 = vld [vmem:[%s3 + $0xa60] sm:$0xff]
    %v1031 = vld [vmem:[%s3 + $0xa68] sm:$0xff]
    %v1032 = vld [vmem:[%s3 + $0xa70] sm:$0xff]
    %v1033 = vld [vmem:[%s3 + $0xa78] sm:$0xff]
    %v1034 = vld [vmem:[%s3 + $0xa80] sm:$0xff]
    %v1035 = vld [vmem:[%s3 + $0xa88] sm:$0xff]
    %v1036 = vld [vmem:[%s3 + $0xa90] sm:$0xff]
    %v1037 = vld [vmem:[%s3 + $0xa98] sm:$0xff]
    %v1038 = vld [vmem:[%s3 + $0xaa0] sm:$0xff]
    %v1039 = vld [vmem:[%s3 + $0xaa8] sm:$0xff]
    %v1040 = vld [vmem:[%s3 + $0xab0] sm:$0xff]
    %v1041 = vld [vmem:[%s3 + $0xab8] sm:$0xff]
    %v1042 = vld [vmem:[%s3 + $0xac0] sm:$0xff]
    %v1043 = vld [vmem:[%s3 + $0xac8] sm:$0xff]
    %v1044 = vld [vmem:[%s3 + $0xad0] sm:$0xff]
    %v1045 = vld [vmem:[%s3 + $0xad8] sm:$0xff]
    %v1046 = vld [vmem:[%s3 + $0xae0] sm:$0xff]
    %v1047 = vld [vmem:[%s3 + $0xae8] sm:$0xff]
    %v1048 = vld [vmem:[%s3 + $0xaf0] sm:$0xff]
    %v1049 = vld [vmem:[%s3 + $0xaf8] sm:$0xff]
    %v1050 = vld [vmem:[%s3 + $0xb00] sm:$0xff]
    %v1051 = vld [vmem:[%s3 + $0xb08] sm:$0xff]
    %v1052 = vld [vmem:[%s3 + $0xb10] sm:$0xff]
    %v1053 = vld [vmem:[%s3 + $0xb18] sm:$0xff]
    %v1054 = vld [vmem:[%s3 + $0xb20] sm:$0xff]
    %v1055 = vld [vmem:[%s3 + $0xb28] sm:$0xff]
    %v1056 = vld [vmem:[%s3 + $0xb30] sm:$0xff]
    %v1057 = vld [vmem:[%s3 + $0xb38] sm:$0xff]
    %v1058 = vld [vmem:[%s3 + $0xb40] sm:$0xff]
    %v1059 = vld [vmem:[%s3 + $0xb48] sm:$0xff]
    %v1060 = vld [vmem:[%s3 + $0xb50] sm:$0xff]
    %v1061 = vld [vmem:[%s3 + $0xb58] sm:$0xff]
    %v1062 = vld [vmem:[%s3 + $0xb60] sm:$0xff]
    %v1063 = vld [vmem:[%s3 + $0xb68] sm:$0xff]
    %v1064 = vld [vmem:[%s3 + $0xb70] sm:$0xff]
    %v1065 = vld [vmem:[%s3 + $0xb78] sm:$0xff]
    %v1066 = vld [vmem:[%s3 + $0xb80] sm:$0xff]
    %v1067 = vld [vmem:[%s3 + $0xb88] sm:$0xff]
    %v1068 = vld [vmem:[%s3 + $0xb90] sm:$0xff]
    %v1069 = vld [vmem:[%s3 + $0xb98] sm:$0xff]
    %v1070 = vld [vmem:[%s3 + $0xba0] sm:$0xff]
    %v1071 = vld [vmem:[%s3 + $0xba8] sm:$0xff]
    %v1072 = vld [vmem:[%s3 + $0xbb0] sm:$0xff]
    %v1073 = vld [vmem:[%s3 + $0xbb8] sm:$0xff]
    %v1074 = vld [vmem:[%s3 + $0xbc0] sm:$0xff]
    %v1075 = vld [vmem:[%s3 + $0xbc8] sm:$0xff]
    %v1076 = vld [vmem:[%s3 + $0xbd0] sm:$0xff]
    %v1077 = vld [vmem:[%s3 + $0xbd8] sm:$0xff]
    %v1078 = vld [vmem:[%s3 + $0xbe0] sm:$0xff]
    %v1079 = vld [vmem:[%s3 + $0xbe8] sm:$0xff]
    %v1080 = vld [vmem:[%s3 + $0xbf0] sm:$0xff]
    %v1081 = vld [vmem:[%s3 + $0xbf8] sm:$0xff]
    %v1082 = vld [vmem:[%s4] sm:$0x1]
    %v1084 = vlaneseq
    %v1085 = vshrl.u32 %v1084, 7
    %v1086 = vsub.s32 0, %v1085
    %v1087 = vrot.slane %v1082, %v1086
    %v1095 = vcombine.low %v692, %v695
    %v1096 = vcombine.high %v692, %v695
    %v1098 = vunpack.c.l.s4 1966171168
    %v1099 = vunpack.c.0.s8 %v1098
    %v1100 = vlaneseq
    %v1101 = vshrl.u32 %v1100, 7
    %v1102 = vsub.s32 %v1099, %v1101
    %v1103 = vrot.slane %v1095, %v1102
    %v1105 = vunpack.c.l.s4 1966171168
    %v1106 = vunpack.c.0.s8 %v1105
    %v1107 = vlaneseq
    %v1108 = vshrl.u32 %v1107, 7
    %v1109 = vsub.s32 %v1106, %v1108
    %v1110 = vrot.slane %v1096, %v1109
    %v1111 = vcombine.high %v1103, %v1103
    %v1112 = vcombine.high %v1110, %v1110
    %v1114 = vunpack.c.l.s4 1966171168
    %v1115 = vunpack.c.0.s8 %v1114
    %v1116 = vlaneseq
    %v1117 = vshrl.u32 %v1116, 7
    %v1118 = vsub.s32 %v1115, %v1117
    %v1119 = vrot.slane %v1103, %v1118
    %v1121 = vunpack.c.l.s4 1966171168
    %v1122 = vunpack.c.0.s8 %v1121
    %v1123 = vlaneseq
    %v1124 = vshrl.u32 %v1123, 7
    %v1125 = vsub.s32 %v1122, %v1124
    %v1126 = vrot.slane %v1110, %v1125
    %v1128 = vunpack.c.l.s4 1966171168
    %v1129 = vunpack.c.0.s8 %v1128
    %v1130 = vlaneseq
    %v1131 = vshrl.u32 %v1130, 7
    %v1132 = vsub.s32 %v1129, %v1131
    %v1133 = vrot.slane %v1111, %v1132
    %v1135 = vunpack.c.l.s4 1966171168
    %v1136 = vunpack.c.0.s8 %v1135
    %v1137 = vlaneseq
    %v1138 = vshrl.u32 %v1137, 7
    %v1139 = vsub.s32 %v1136, %v1138
    %v1140 = vrot.slane %v1112, %v1139
    %v1141 = vcombine.high %v1119, %v1119
    %v1142 = vcombine.high %v1126, %v1126
    %v1143 = vcombine.high %v1133, %v1133
    %v1144 = vcombine.high %v1140, %v1140
    %v1145 = vcombine.low %v693, %v696
    %v1146 = vcombine.high %v693, %v696
    %v1148 = vunpack.c.l.s4 1966171168
    %v1149 = vunpack.c.0.s8 %v1148
    %v1150 = vlaneseq
    %v1151 = vshrl.u32 %v1150, 7
    %v1152 = vsub.s32 %v1149, %v1151
    %v1153 = vrot.slane %v1145, %v1152
    %v1155 = vunpack.c.l.s4 1966171168
    %v1156 = vunpack.c.0.s8 %v1155
    %v1157 = vlaneseq
    %v1158 = vshrl.u32 %v1157, 7
    %v1159 = vsub.s32 %v1156, %v1158
    %v1160 = vrot.slane %v1146, %v1159
    %v1161 = vcombine.high %v1153, %v1153
    %v1162 = vcombine.high %v1160, %v1160
    %v1164 = vunpack.c.l.s4 1966171168
    %v1165 = vunpack.c.0.s8 %v1164
    %v1166 = vlaneseq
    %v1167 = vshrl.u32 %v1166, 7
    %v1168 = vsub.s32 %v1165, %v1167
    %v1169 = vrot.slane %v1153, %v1168
    %v1171 = vunpack.c.l.s4 1966171168
    %v1172 = vunpack.c.0.s8 %v1171
    %v1173 = vlaneseq
    %v1174 = vshrl.u32 %v1173, 7
    %v1175 = vsub.s32 %v1172, %v1174
    %v1176 = vrot.slane %v1160, %v1175
    %v1178 = vunpack.c.l.s4 1966171168
    %v1179 = vunpack.c.0.s8 %v1178
    %v1180 = vlaneseq
    %v1181 = vshrl.u32 %v1180, 7
    %v1182 = vsub.s32 %v1179, %v1181
    %v1183 = vrot.slane %v1161, %v1182
    %v1185 = vunpack.c.l.s4 1966171168
    %v1186 = vunpack.c.0.s8 %v1185
    %v1187 = vlaneseq
    %v1188 = vshrl.u32 %v1187, 7
    %v1189 = vsub.s32 %v1186, %v1188
    %v1190 = vrot.slane %v1162, %v1189
    %v1191 = vcombine.high %v1169, %v1169
    %v1192 = vcombine.high %v1176, %v1176
    %v1193 = vcombine.high %v1183, %v1183
    %v1194 = vcombine.high %v1190, %v1190
    %v1195 = vcombine.low %v694, %v697
    %v1196 = vcombine.high %v694, %v697
    %v1198 = vunpack.c.l.s4 1966171168
    %v1199 = vunpack.c.0.s8 %v1198
    %v1200 = vlaneseq
    %v1201 = vshrl.u32 %v1200, 7
    %v1202 = vsub.s32 %v1199, %v1201
    %v1203 = vrot.slane %v1195, %v1202
    %v1205 = vunpack.c.l.s4 1966171168
    %v1206 = vunpack.c.0.s8 %v1205
    %v1207 = vlaneseq
    %v1208 = vshrl.u32 %v1207, 7
    %v1209 = vsub.s32 %v1206, %v1208
    %v1210 = vrot.slane %v1196, %v1209
    %v1211 = vcombine.high %v1203, %v1203
    %v1212 = vcombine.high %v1210, %v1210
    %v1214 = vunpack.c.l.s4 1966171168
    %v1215 = vunpack.c.0.s8 %v1214
    %v1216 = vlaneseq
    %v1217 = vshrl.u32 %v1216, 7
    %v1218 = vsub.s32 %v1215, %v1217
    %v1219 = vrot.slane %v1203, %v1218
    %v1221 = vunpack.c.l.s4 1966171168
    %v1222 = vunpack.c.0.s8 %v1221
    %v1223 = vlaneseq
    %v1224 = vshrl.u32 %v1223, 7
    %v1225 = vsub.s32 %v1222, %v1224
    %v1226 = vrot.slane %v1210, %v1225
    %v1228 = vunpack.c.l.s4 1966171168
    %v1229 = vunpack.c.0.s8 %v1228
    %v1230 = vlaneseq
    %v1231 = vshrl.u32 %v1230, 7
    %v1232 = vsub.s32 %v1229, %v1231
    %v1233 = vrot.slane %v1211, %v1232
    %v1235 = vunpack.c.l.s4 1966171168
    %v1236 = vunpack.c.0.s8 %v1235
    %v1237 = vlaneseq
    %v1238 = vshrl.u32 %v1237, 7
    %v1239 = vsub.s32 %v1236, %v1238
    %v1240 = vrot.slane %v1212, %v1239
    %v1241 = vcombine.high %v1219, %v1219
    %v1242 = vcombine.high %v1226, %v1226
    %v1243 = vcombine.high %v1233, %v1233
    %v1244 = vcombine.high %v1240, %v1240
    %1269 = vmatprep.subr.mxu0 0.0
    %1270 = vmatpush1.msra.mxu0 %v698
    %1271 = vmatprep.subr.mxu0 0.0
    %1272 = vmatpush1.msra.mxu0 %v699
    %1273 = vmatprep.subr.mxu0 0.0
    %1274 = vmatpush1.msra.mxu0 %v700
    %1275 = vmatprep.subr.mxu0 0.0
    %1276 = vmatpush1.msra.mxu0 %v701
    %1277 = vmatprep.subr.mxu0 0.0
    %1278 = vmatpush1.msra.mxu0 %v702
    %1279 = vmatprep.subr.mxu0 0.0
    %1280 = vmatpush1.msra.mxu0 %v703
    %1281 = vmatprep.subr.mxu0 0.0
    %1282 = vmatpush1.msra.mxu0 %v704
    %1283 = vmatprep.subr.mxu0 0.0
    %1284 = vmatpush1.msra.mxu0 %v705
    %1285 = vmatprep.subr.mxu0 0.0
    %1286 = vmatpush1.msra.mxu0 %v706
    %1287 = vmatprep.subr.mxu0 0.0
    %1288 = vmatpush1.msra.mxu0 %v707
    %1289 = vmatprep.subr.mxu0 0.0
    %1290 = vmatpush1.msra.mxu0 %v708
    %1291 = vmatprep.subr.mxu0 0.0
    %1292 = vmatpush1.msra.mxu0 %v709
    %1293 = vmatprep.subr.mxu0 0.0
    %1294 = vmatpush1.msra.mxu0 %v710
    %1295 = vmatprep.subr.mxu0 0.0
    %1296 = vmatpush1.msra.mxu0 %v711
    %1297 = vmatprep.subr.mxu0 0.0
    %1298 = vmatpush1.msra.mxu0 %v712
    %1299 = vmatprep.subr.mxu0 0.0
    %1300 = vmatpush1.msra.mxu0 %v713
    %1301 = vmatprep.subr.mxu0 0.0
    %1302 = vmatpush1.msra.mxu0 %v714
    %1303 = vmatprep.subr.mxu0 0.0
    %1304 = vmatpush1.msra.mxu0 %v715
    %1305 = vmatprep.subr.mxu0 0.0
    %1306 = vmatpush1.msra.mxu0 %v716
    %1307 = vmatprep.subr.mxu0 0.0
    %1308 = vmatpush1.msra.mxu0 %v717
    %1309 = vmatprep.subr.mxu0 0.0
    %1310 = vmatpush1.msra.mxu0 %v718
    %1311 = vmatprep.subr.mxu0 0.0
    %1312 = vmatpush1.msra.mxu0 %v719
    %1313 = vmatprep.subr.mxu0 0.0
    %1314 = vmatpush1.msra.mxu0 %v720
    %1315 = vmatprep.subr.mxu0 0.0
    %1316 = vmatpush1.msra.mxu0 %v721
    %1317 = vmatprep.subr.mxu0 0.0
    %1318 = vmatpush1.msra.mxu0 %v722
    %1319 = vmatprep.subr.mxu0 0.0
    %1320 = vmatpush1.msra.mxu0 %v723
    %1321 = vmatprep.subr.mxu0 0.0
    %1322 = vmatpush1.msra.mxu0 %v724
    %1323 = vmatprep.subr.mxu0 0.0
    %1324 = vmatpush1.msra.mxu0 %v725
    %1325 = vmatprep.subr.mxu0 0.0
    %1326 = vmatpush1.msra.mxu0 %v726
    %1327 = vmatprep.subr.mxu0 0.0
    %1328 = vmatpush1.msra.mxu0 %v727
    %1329 = vmatprep.subr.mxu0 0.0
    %1330 = vmatpush1.msra.mxu0 %v728
    %1331 = vmatprep.subr.mxu0 0.0
    %1332 = vmatpush1.msra.mxu0 %v729
    %1333 = vmatprep.mubr.f32.mxu0 %v1133
    %1334 = vmatmul.mubr.f32.gmra.mrb[0].mxu0 %v1119
    %v1335 = vpop.f32.mrb[0].mxu0
    %v1336 = vadd.f32 %v1087, %v1335
    %v1337 = vpop.f32.mrb[0].mxu0
    %1338 = vdwg.mxu0
    %1339 = vmatprep.subr.mxu0 0.0
    %1340 = vmatpush1.msra.mxu0 %v730
    %1341 = vmatprep.subr.mxu0 0.0
    %1342 = vmatpush1.msra.mxu0 %v731
    %1343 = vmatprep.subr.mxu0 0.0
    %1344 = vmatpush1.msra.mxu0 %v732
    %1345 = vmatprep.subr.mxu0 0.0
    %1346 = vmatpush1.msra.mxu0 %v733
    %1347 = vmatprep.subr.mxu0 0.0
    %1348 = vmatpush1.msra.mxu0 %v734
    %1349 = vmatprep.subr.mxu0 0.0
    %1350 = vmatpush1.msra.mxu0 %v735
    %1351 = vmatprep.subr.mxu0 0.0
    %1352 = vmatpush1.msra.mxu0 %v736
    %1353 = vmatprep.subr.mxu0 0.0
    %1354 = vmatpush1.msra.mxu0 %v737
    %1355 = vmatprep.subr.mxu0 0.0
    %1356 = vmatpush1.msra.mxu0 %v738
    %1357 = vmatprep.subr.mxu0 0.0
    %1358 = vmatpush1.msra.mxu0 %v739
    %1359 = vmatprep.subr.mxu0 0.0
    %1360 = vmatpush1.msra.mxu0 %v740
    %1361 = vmatprep.subr.mxu0 0.0
    %1362 = vmatpush1.msra.mxu0 %v741
    %1363 = vmatprep.subr.mxu0 0.0
    %1364 = vmatpush1.msra.mxu0 %v742
    %1365 = vmatprep.subr.mxu0 0.0
    %1366 = vmatpush1.msra.mxu0 %v743
    %1367 = vmatprep.subr.mxu0 0.0
    %1368 = vmatpush1.msra.mxu0 %v744
    %1369 = vmatprep.subr.mxu0 0.0
    %1370 = vmatpush1.msra.mxu0 %v745
    %1371 = vmatprep.subr.mxu0 0.0
    %1372 = vmatpush1.msra.mxu0 %v746
    %1373 = vmatprep.subr.mxu0 0.0
    %1374 = vmatpush1.msra.mxu0 %v747
    %1375 = vmatprep.subr.mxu0 0.0
    %1376 = vmatpush1.msra.mxu0 %v748
    %1377 = vmatprep.subr.mxu0 0.0
    %1378 = vmatpush1.msra.mxu0 %v749
    %1379 = vmatprep.subr.mxu0 0.0
    %1380 = vmatpush1.msra.mxu0 %v750
    %1381 = vmatprep.subr.mxu0 0.0
    %1382 = vmatpush1.msra.mxu0 %v751
    %1383 = vmatprep.subr.mxu0 0.0
    %1384 = vmatpush1.msra.mxu0 %v752
    %1385 = vmatprep.subr.mxu0 0.0
    %1386 = vmatpush1.msra.mxu0 %v753
    %1387 = vmatprep.subr.mxu0 0.0
    %1388 = vmatpush1.msra.mxu0 %v754
    %1389 = vmatprep.subr.mxu0 0.0
    %1390 = vmatpush1.msra.mxu0 %v755
    %1391 = vmatprep.subr.mxu0 0.0
    %1392 = vmatpush1.msra.mxu0 %v756
    %1393 = vmatprep.subr.mxu0 0.0
    %1394 = vmatpush1.msra.mxu0 %v757
    %1395 = vmatprep.subr.mxu0 0.0
    %1396 = vmatpush1.msra.mxu0 %v758
    %1397 = vmatprep.subr.mxu0 0.0
    %1398 = vmatpush1.msra.mxu0 %v759
    %1399 = vmatprep.subr.mxu0 0.0
    %1400 = vmatpush1.msra.mxu0 %v760
    %1401 = vmatprep.subr.mxu0 0.0
    %1402 = vmatpush1.msra.mxu0 %v761
    %1403 = vmatprep.mubr.f32.mxu0 %v1143
    %1404 = vmatmul.mubr.f32.gmra.mrb[0].mxu0 %v1141
    %v1405 = vpop.f32.mrb[0].mxu0
    %v1406 = vadd.f32 %v1336, %v1405
    %v1407 = vpop.f32.mrb[0].mxu0
    %1408 = vdwg.mxu0
    %1409 = vmatprep.subr.mxu0 0.0
    %1410 = vmatpush1.msra.mxu0 %v762
    %1411 = vmatprep.subr.mxu0 0.0
    %1412 = vmatpush1.msra.mxu0 %v763
    %1413 = vmatprep.subr.mxu0 0.0
    %1414 = vmatpush1.msra.mxu0 %v764
    %1415 = vmatprep.subr.mxu0 0.0
    %1416 = vmatpush1.msra.mxu0 %v765
    %1417 = vmatprep.subr.mxu0 0.0
    %1418 = vmatpush1.msra.mxu0 %v766
    %1419 = vmatprep.subr.mxu0 0.0
    %1420 = vmatpush1.msra.mxu0 %v767
    %1421 = vmatprep.subr.mxu0 0.0
    %1422 = vmatpush1.msra.mxu0 %v768
    %1423 = vmatprep.subr.mxu0 0.0
    %1424 = vmatpush1.msra.mxu0 %v769
    %1425 = vmatprep.subr.mxu0 0.0
    %1426 = vmatpush1.msra.mxu0 %v770
    %1427 = vmatprep.subr.mxu0 0.0
    %1428 = vmatpush1.msra.mxu0 %v771
    %1429 = vmatprep.subr.mxu0 0.0
    %1430 = vmatpush1.msra.mxu0 %v772
    %1431 = vmatprep.subr.mxu0 0.0
    %1432 = vmatpush1.msra.mxu0 %v773
    %1433 = vmatprep.subr.mxu0 0.0
    %1434 = vmatpush1.msra.mxu0 %v774
    %1435 = vmatprep.subr.mxu0 0.0
    %1436 = vmatpush1.msra.mxu0 %v775
    %1437 = vmatprep.subr.mxu0 0.0
    %1438 = vmatpush1.msra.mxu0 %v776
    %1439 = vmatprep.subr.mxu0 0.0
    %1440 = vmatpush1.msra.mxu0 %v777
    %1441 = vmatprep.subr.mxu0 0.0
    %1442 = vmatpush1.msra.mxu0 %v778
    %1443 = vmatprep.subr.mxu0 0.0
    %1444 = vmatpush1.msra.mxu0 %v779
    %1445 = vmatprep.subr.mxu0 0.0
    %1446 = vmatpush1.msra.mxu0 %v780
    %1447 = vmatprep.subr.mxu0 0.0
    %1448 = vmatpush1.msra.mxu0 %v781
    %1449 = vmatprep.subr.mxu0 0.0
    %1450 = vmatpush1.msra.mxu0 %v782
    %1451 = vmatprep.subr.mxu0 0.0
    %1452 = vmatpush1.msra.mxu0 %v783
    %1453 = vmatprep.subr.mxu0 0.0
    %1454 = vmatpush1.msra.mxu0 %v784
    %1455 = vmatprep.subr.mxu0 0.0
    %1456 = vmatpush1.msra.mxu0 %v785
    %1457 = vmatprep.subr.mxu0 0.0
    %1458 = vmatpush1.msra.mxu0 %v786
    %1459 = vmatprep.subr.mxu0 0.0
    %1460 = vmatpush1.msra.mxu0 %v787
    %1461 = vmatprep.subr.mxu0 0.0
    %1462 = vmatpush1.msra.mxu0 %v788
    %1463 = vmatprep.subr.mxu0 0.0
    %1464 = vmatpush1.msra.mxu0 %v789
    %1465 = vmatprep.subr.mxu0 0.0
    %1466 = vmatpush1.msra.mxu0 %v790
    %1467 = vmatprep.subr.mxu0 0.0
    %1468 = vmatpush1.msra.mxu0 %v791
    %1469 = vmatprep.subr.mxu0 0.0
    %1470 = vmatpush1.msra.mxu0 %v792
    %1471 = vmatprep.subr.mxu0 0.0
    %1472 = vmatpush1.msra.mxu0 %v793
    %1473 = vmatprep.mubr.f32.mxu0 %v1140
    %1474 = vmatmul.mubr.f32.gmra.mrb[0].mxu0 %v1126
    %v1475 = vpop.f32.mrb[0].mxu0
    %v1476 = vadd.f32 %v1406, %v1475
    %v1477 = vpop.f32.mrb[0].mxu0
    %1478 = vdwg.mxu0
    %1479 = vmatprep.subr.mxu0 0.0
    %1480 = vmatpush1.msra.mxu0 %v794
    %1481 = vmatprep.subr.mxu0 0.0
    %1482 = vmatpush1.msra.mxu0 %v795
    %1483 = vmatprep.subr.mxu0 0.0
    %1484 = vmatpush1.msra.mxu0 %v796
    %1485 = vmatprep.subr.mxu0 0.0
    %1486 = vmatpush1.msra.mxu0 %v797
    %1487 = vmatprep.subr.mxu0 0.0
    %1488 = vmatpush1.msra.mxu0 %v798
    %1489 = vmatprep.subr.mxu0 0.0
    %1490 = vmatpush1.msra.mxu0 %v799
    %1491 = vmatprep.subr.mxu0 0.0
    %1492 = vmatpush1.msra.mxu0 %v800
    %1493 = vmatprep.subr.mxu0 0.0
    %1494 = vmatpush1.msra.mxu0 %v801
    %1495 = vmatprep.subr.mxu0 0.0
    %1496 = vmatpush1.msra.mxu0 %v802
    %1497 = vmatprep.subr.mxu0 0.0
    %1498 = vmatpush1.msra.mxu0 %v803
    %1499 = vmatprep.subr.mxu0 0.0
    %1500 = vmatpush1.msra.mxu0 %v804
    %1501 = vmatprep.subr.mxu0 0.0
    %1502 = vmatpush1.msra.mxu0 %v805
    %1503 = vmatprep.subr.mxu0 0.0
    %1504 = vmatpush1.msra.mxu0 %v806
    %1505 = vmatprep.subr.mxu0 0.0
    %1506 = vmatpush1.msra.mxu0 %v807
    %1507 = vmatprep.subr.mxu0 0.0
    %1508 = vmatpush1.msra.mxu0 %v808
    %1509 = vmatprep.subr.mxu0 0.0
    %1510 = vmatpush1.msra.mxu0 %v809
    %1511 = vmatprep.subr.mxu0 0.0
    %1512 = vmatpush1.msra.mxu0 %v810
    %1513 = vmatprep.subr.mxu0 0.0
    %1514 = vmatpush1.msra.mxu0 %v811
    %1515 = vmatprep.subr.mxu0 0.0
    %1516 = vmatpush1.msra.mxu0 %v812
    %1517 = vmatprep.subr.mxu0 0.0
    %1518 = vmatpush1.msra.mxu0 %v813
    %1519 = vmatprep.subr.mxu0 0.0
    %1520 = vmatpush1.msra.mxu0 %v814
    %1521 = vmatprep.subr.mxu0 0.0
    %1522 = vmatpush1.msra.mxu0 %v815
    %1523 = vmatprep.subr.mxu0 0.0
    %1524 = vmatpush1.msra.mxu0 %v816
    %1525 = vmatprep.subr.mxu0 0.0
    %1526 = vmatpush1.msra.mxu0 %v817
    %1527 = vmatprep.subr.mxu0 0.0
    %1528 = vmatpush1.msra.mxu0 %v818
    %1529 = vmatprep.subr.mxu0 0.0
    %1530 = vmatpush1.msra.mxu0 %v819
    %1531 = vmatprep.subr.mxu0 0.0
    %1532 = vmatpush1.msra.mxu0 %v820
    %1533 = vmatprep.subr.mxu0 0.0
    %1534 = vmatpush1.msra.mxu0 %v821
    %1535 = vmatprep.subr.mxu0 0.0
    %1536 = vmatpush1.msra.mxu0 %v822
    %1537 = vmatprep.subr.mxu0 0.0
    %1538 = vmatpush1.msra.mxu0 %v823
    %1539 = vmatprep.subr.mxu0 0.0
    %1540 = vmatpush1.msra.mxu0 %v824
    %1541 = vmatprep.subr.mxu0 0.0
    %1542 = vmatpush1.msra.mxu0 %v825
    %1543 = vmatprep.mubr.f32.mxu0 %v1144
    %1544 = vmatmul.mubr.f32.gmra.mrb[0].mxu0 %v1142
    %v1545 = vpop.f32.mrb[0].mxu0
    %v1546 = vadd.f32 %v1476, %v1545
    %v1547 = vpop.f32.mrb[0].mxu0
    %1548 = vdwg.mxu0
    %1549 = vmatprep.subr.mxu0 0.0
    %1550 = vmatpush1.msra.mxu0 %v826
    %1551 = vmatprep.subr.mxu0 0.0
    %1552 = vmatpush1.msra.mxu0 %v827
    %1553 = vmatprep.subr.mxu0 0.0
    %1554 = vmatpush1.msra.mxu0 %v828
    %1555 = vmatprep.subr.mxu0 0.0
    %1556 = vmatpush1.msra.mxu0 %v829
    %1557 = vmatprep.subr.mxu0 0.0
    %1558 = vmatpush1.msra.mxu0 %v830
    %1559 = vmatprep.subr.mxu0 0.0
    %1560 = vmatpush1.msra.mxu0 %v831
    %1561 = vmatprep.subr.mxu0 0.0
    %1562 = vmatpush1.msra.mxu0 %v832
    %1563 = vmatprep.subr.mxu0 0.0
    %1564 = vmatpush1.msra.mxu0 %v833
    %1565 = vmatprep.subr.mxu0 0.0
    %1566 = vmatpush1.msra.mxu0 %v834
    %1567 = vmatprep.subr.mxu0 0.0
    %1568 = vmatpush1.msra.mxu0 %v835
    %1569 = vmatprep.subr.mxu0 0.0
    %1570 = vmatpush1.msra.mxu0 %v836
    %1571 = vmatprep.subr.mxu0 0.0
    %1572 = vmatpush1.msra.mxu0 %v837
    %1573 = vmatprep.subr.mxu0 0.0
    %1574 = vmatpush1.msra.mxu0 %v838
    %1575 = vmatprep.subr.mxu0 0.0
    %1576 = vmatpush1.msra.mxu0 %v839
    %1577 = vmatprep.subr.mxu0 0.0
    %1578 = vmatpush1.msra.mxu0 %v840
    %1579 = vmatprep.subr.mxu0 0.0
    %1580 = vmatpush1.msra.mxu0 %v841
    %1581 = vmatprep.subr.mxu0 0.0
    %1582 = vmatpush1.msra.mxu0 %v842
    %1583 = vmatprep.subr.mxu0 0.0
    %1584 = vmatpush1.msra.mxu0 %v843
    %1585 = vmatprep.subr.mxu0 0.0
    %1586 = vmatpush1.msra.mxu0 %v844
    %1587 = vmatprep.subr.mxu0 0.0
    %1588 = vmatpush1.msra.mxu0 %v845
    %1589 = vmatprep.subr.mxu0 0.0
    %1590 = vmatpush1.msra.mxu0 %v846
    %1591 = vmatprep.subr.mxu0 0.0
    %1592 = vmatpush1.msra.mxu0 %v847
    %1593 = vmatprep.subr.mxu0 0.0
    %1594 = vmatpush1.msra.mxu0 %v848
    %1595 = vmatprep.subr.mxu0 0.0
    %1596 = vmatpush1.msra.mxu0 %v849
    %1597 = vmatprep.subr.mxu0 0.0
    %1598 = vmatpush1.msra.mxu0 %v850
    %1599 = vmatprep.subr.mxu0 0.0
    %1600 = vmatpush1.msra.mxu0 %v851
    %1601 = vmatprep.subr.mxu0 0.0
    %1602 = vmatpush1.msra.mxu0 %v852
    %1603 = vmatprep.subr.mxu0 0.0
    %1604 = vmatpush1.msra.mxu0 %v853
    %1605 = vmatprep.subr.mxu0 0.0
    %1606 = vmatpush1.msra.mxu0 %v854
    %1607 = vmatprep.subr.mxu0 0.0
    %1608 = vmatpush1.msra.mxu0 %v855
    %1609 = vmatprep.subr.mxu0 0.0
    %1610 = vmatpush1.msra.mxu0 %v856
    %1611 = vmatprep.subr.mxu0 0.0
    %1612 = vmatpush1.msra.mxu0 %v857
    %1613 = vmatprep.mubr.f32.mxu0 %v1183
    %1614 = vmatmul.mubr.f32.gmra.mrb[0].mxu0 %v1169
    %v1615 = vpop.f32.mrb[0].mxu0
    %v1616 = vadd.f32 %v1546, %v1615
    %v1617 = vpop.f32.mrb[0].mxu0
    %1618 = vdwg.mxu0
    %1619 = vmatprep.subr.mxu0 0.0
    %1620 = vmatpush1.msra.mxu0 %v858
    %1621 = vmatprep.subr.mxu0 0.0
    %1622 = vmatpush1.msra.mxu0 %v859
    %1623 = vmatprep.subr.mxu0 0.0
    %1624 = vmatpush1.msra.mxu0 %v860
    %1625 = vmatprep.subr.mxu0 0.0
    %1626 = vmatpush1.msra.mxu0 %v861
    %1627 = vmatprep.subr.mxu0 0.0
    %1628 = vmatpush1.msra.mxu0 %v862
    %1629 = vmatprep.subr.mxu0 0.0
    %1630 = vmatpush1.msra.mxu0 %v863
    %1631 = vmatprep.subr.mxu0 0.0
    %1632 = vmatpush1.msra.mxu0 %v864
    %1633 = vmatprep.subr.mxu0 0.0
    %1634 = vmatpush1.msra.mxu0 %v865
    %1635 = vmatprep.subr.mxu0 0.0
    %1636 = vmatpush1.msra.mxu0 %v866
    %1637 = vmatprep.subr.mxu0 0.0
    %1638 = vmatpush1.msra.mxu0 %v867
    %1639 = vmatprep.subr.mxu0 0.0
    %1640 = vmatpush1.msra.mxu0 %v868
    %1641 = vmatprep.subr.mxu0 0.0
    %1642 = vmatpush1.msra.mxu0 %v869
    %1643 = vmatprep.subr.mxu0 0.0
    %1644 = vmatpush1.msra.mxu0 %v870
    %1645 = vmatprep.subr.mxu0 0.0
    %1646 = vmatpush1.msra.mxu0 %v871
    %1647 = vmatprep.subr.mxu0 0.0
    %1648 = vmatpush1.msra.mxu0 %v872
    %1649 = vmatprep.subr.mxu0 0.0
    %1650 = vmatpush1.msra.mxu0 %v873
    %1651 = vmatprep.subr.mxu0 0.0
    %1652 = vmatpush1.msra.mxu0 %v874
    %1653 = vmatprep.subr.mxu0 0.0
    %1654 = vmatpush1.msra.mxu0 %v875
    %1655 = vmatprep.subr.mxu0 0.0
    %1656 = vmatpush1.msra.mxu0 %v876
    %1657 = vmatprep.subr.mxu0 0.0
    %1658 = vmatpush1.msra.mxu0 %v877
    %1659 = vmatprep.subr.mxu0 0.0
    %1660 = vmatpush1.msra.mxu0 %v878
    %1661 = vmatprep.subr.mxu0 0.0
    %1662 = vmatpush1.msra.mxu0 %v879
    %1663 = vmatprep.subr.mxu0 0.0
    %1664 = vmatpush1.msra.mxu0 %v880
    %1665 = vmatprep.subr.mxu0 0.0
    %1666 = vmatpush1.msra.mxu0 %v881
    %1667 = vmatprep.subr.mxu0 0.0
    %1668 = vmatpush1.msra.mxu0 %v882
    %1669 = vmatprep.subr.mxu0 0.0
    %1670 = vmatpush1.msra.mxu0 %v883
    %1671 = vmatprep.subr.mxu0 0.0
    %1672 = vmatpush1.msra.mxu0 %v884
    %1673 = vmatprep.subr.mxu0 0.0
    %1674 = vmatpush1.msra.mxu0 %v885
    %1675 = vmatprep.subr.mxu0 0.0
    %1676 = vmatpush1.msra.mxu0 %v886
    %1677 = vmatprep.subr.mxu0 0.0
    %1678 = vmatpush1.msra.mxu0 %v887
    %1679 = vmatprep.subr.mxu0 0.0
    %1680 = vmatpush1.msra.mxu0 %v888
    %1681 = vmatprep.subr.mxu0 0.0
    %1682 = vmatpush1.msra.mxu0 %v889
    %1683 = vmatprep.mubr.f32.mxu0 %v1193
    %1684 = vmatmul.mubr.f32.gmra.mrb[0].mxu0 %v1191
    %v1685 = vpop.f32.mrb[0].mxu0
    %v1686 = vadd.f32 %v1616, %v1685
    %v1687 = vpop.f32.mrb[0].mxu0
    %1688 = vdwg.mxu0
    %1689 = vmatprep.subr.mxu0 0.0
    %1690 = vmatpush1.msra.mxu0 %v890
    %1691 = vmatprep.subr.mxu0 0.0
    %1692 = vmatpush1.msra.mxu0 %v891
    %1693 = vmatprep.subr.mxu0 0.0
    %1694 = vmatpush1.msra.mxu0 %v892
    %1695 = vmatprep.subr.mxu0 0.0
    %1696 = vmatpush1.msra.mxu0 %v893
    %1697 = vmatprep.subr.mxu0 0.0
    %1698 = vmatpush1.msra.mxu0 %v894
    %1699 = vmatprep.subr.mxu0 0.0
    %1700 = vmatpush1.msra.mxu0 %v895
    %1701 = vmatprep.subr.mxu0 0.0
    %1702 = vmatpush1.msra.mxu0 %v896
    %1703 = vmatprep.subr.mxu0 0.0
    %1704 = vmatpush1.msra.mxu0 %v897
    %1705 = vmatprep.subr.mxu0 0.0
    %1706 = vmatpush1.msra.mxu0 %v898
    %1707 = vmatprep.subr.mxu0 0.0
    %1708 = vmatpush1.msra.mxu0 %v899
    %1709 = vmatprep.subr.mxu0 0.0
    %1710 = vmatpush1.msra.mxu0 %v900
    %1711 = vmatprep.subr.mxu0 0.0
    %1712 = vmatpush1.msra.mxu0 %v901
    %1713 = vmatprep.subr.mxu0 0.0
    %1714 = vmatpush1.msra.mxu0 %v902
    %1715 = vmatprep.subr.mxu0 0.0
    %1716 = vmatpush1.msra.mxu0 %v903
    %1717 = vmatprep.subr.mxu0 0.0
    %1718 = vmatpush1.msra.mxu0 %v904
    %1719 = vmatprep.subr.mxu0 0.0
    %1720 = vmatpush1.msra.mxu0 %v905
    %1721 = vmatprep.subr.mxu0 0.0
    %1722 = vmatpush1.msra.mxu0 %v906
    %1723 = vmatprep.subr.mxu0 0.0
    %1724 = vmatpush1.msra.mxu0 %v907
    %1725 = vmatprep.subr.mxu0 0.0
    %1726 = vmatpush1.msra.mxu0 %v908
    %1727 = vmatprep.subr.mxu0 0.0
    %1728 = vmatpush1.msra.mxu0 %v909
    %1729 = vmatprep.subr.mxu0 0.0
    %1730 = vmatpush1.msra.mxu0 %v910
    %1731 = vmatprep.subr.mxu0 0.0
    %1732 = vmatpush1.msra.mxu0 %v911
    %1733 = vmatprep.subr.mxu0 0.0
    %1734 = vmatpush1.msra.mxu0 %v912
    %1735 = vmatprep.subr.mxu0 0.0
    %1736 = vmatpush1.msra.mxu0 %v913
    %1737 = vmatprep.subr.mxu0 0.0
    %1738 = vmatpush1.msra.mxu0 %v914
    %1739 = vmatprep.subr.mxu0 0.0
    %1740 = vmatpush1.msra.mxu0 %v915
    %1741 = vmatprep.subr.mxu0 0.0
    %1742 = vmatpush1.msra.mxu0 %v916
    %1743 = vmatprep.subr.mxu0 0.0
    %1744 = vmatpush1.msra.mxu0 %v917
    %1745 = vmatprep.subr.mxu0 0.0
    %1746 = vmatpush1.msra.mxu0 %v918
    %1747 = vmatprep.subr.mxu0 0.0
    %1748 = vmatpush1.msra.mxu0 %v919
    %1749 = vmatprep.subr.mxu0 0.0
    %1750 = vmatpush1.msra.mxu0 %v920
    %1751 = vmatprep.subr.mxu0 0.0
    %1752 = vmatpush1.msra.mxu0 %v921
    %1753 = vmatprep.mubr.f32.mxu0 %v1190
    %1754 = vmatmul.mubr.f32.gmra.mrb[0].mxu0 %v1176
    %v1755 = vpop.f32.mrb[0].mxu0
    %v1756 = vadd.f32 %v1686, %v1755
    %v1757 = vpop.f32.mrb[0].mxu0
    %1758 = vdwg.mxu0
    %1759 = vmatprep.subr.mxu0 0.0
    %1760 = vmatpush1.msra.mxu0 %v922
    %1761 = vmatprep.subr.mxu0 0.0
    %1762 = vmatpush1.msra.mxu0 %v923
    %1763 = vmatprep.subr.mxu0 0.0
    %1764 = vmatpush1.msra.mxu0 %v924
    %1765 = vmatprep.subr.mxu0 0.0
    %1766 = vmatpush1.msra.mxu0 %v925
    %1767 = vmatprep.subr.mxu0 0.0
    %1768 = vmatpush1.msra.mxu0 %v926
    %1769 = vmatprep.subr.mxu0 0.0
    %1770 = vmatpush1.msra.mxu0 %v927
    %1771 = vmatprep.subr.mxu0 0.0
    %1772 = vmatpush1.msra.mxu0 %v928
    %1773 = vmatprep.subr.mxu0 0.0
    %1774 = vmatpush1.msra.mxu0 %v929
    %1775 = vmatprep.subr.mxu0 0.0
    %1776 = vmatpush1.msra.mxu0 %v930
    %1777 = vmatprep.subr.mxu0 0.0
    %1778 = vmatpush1.msra.mxu0 %v931
    %1779 = vmatprep.subr.mxu0 0.0
    %1780 = vmatpush1.msra.mxu0 %v932
    %1781 = vmatprep.subr.mxu0 0.0
    %1782 = vmatpush1.msra.mxu0 %v933
    %1783 = vmatprep.subr.mxu0 0.0
    %1784 = vmatpush1.msra.mxu0 %v934
    %1785 = vmatprep.subr.mxu0 0.0
    %1786 = vmatpush1.msra.mxu0 %v935
    %1787 = vmatprep.subr.mxu0 0.0
    %1788 = vmatpush1.msra.mxu0 %v936
    %1789 = vmatprep.subr.mxu0 0.0
    %1790 = vmatpush1.msra.mxu0 %v937
    %1791 = vmatprep.subr.mxu0 0.0
    %1792 = vmatpush1.msra.mxu0 %v938
    %1793 = vmatprep.subr.mxu0 0.0
    %1794 = vmatpush1.msra.mxu0 %v939
    %1795 = vmatprep.subr.mxu0 0.0
    %1796 = vmatpush1.msra.mxu0 %v940
    %1797 = vmatprep.subr.mxu0 0.0
    %1798 = vmatpush1.msra.mxu0 %v941
    %1799 = vmatprep.subr.mxu0 0.0
    %1800 = vmatpush1.msra.mxu0 %v942
    %1801 = vmatprep.subr.mxu0 0.0
    %1802 = vmatpush1.msra.mxu0 %v943
    %1803 = vmatprep.subr.mxu0 0.0
    %1804 = vmatpush1.msra.mxu0 %v944
    %1805 = vmatprep.subr.mxu0 0.0
    %1806 = vmatpush1.msra.mxu0 %v945
    %1807 = vmatprep.subr.mxu0 0.0
    %1808 = vmatpush1.msra.mxu0 %v946
    %1809 = vmatprep.subr.mxu0 0.0
    %1810 = vmatpush1.msra.mxu0 %v947
    %1811 = vmatprep.subr.mxu0 0.0
    %1812 = vmatpush1.msra.mxu0 %v948
    %1813 = vmatprep.subr.mxu0 0.0
    %1814 = vmatpush1.msra.mxu0 %v949
    %1815 = vmatprep.subr.mxu0 0.0
    %1816 = vmatpush1.msra.mxu0 %v950
    %1817 = vmatprep.subr.mxu0 0.0
    %1818 = vmatpush1.msra.mxu0 %v951
    %1819 = vmatprep.subr.mxu0 0.0
    %1820 = vmatpush1.msra.mxu0 %v952
    %1821 = vmatprep.subr.mxu0 0.0
    %1822 = vmatpush1.msra.mxu0 %v953
    %1823 = vmatprep.mubr.f32.mxu0 %v1194
    %1824 = vmatmul.mubr.f32.gmra.mrb[0].mxu0 %v1192
    %v1825 = vpop.f32.mrb[0].mxu0
    %v1826 = vadd.f32 %v1756, %v1825
    %v1827 = vpop.f32.mrb[0].mxu0
    %1828 = vdwg.mxu0
    %1829 = vmatprep.subr.mxu0 0.0
    %1830 = vmatpush1.msra.mxu0 %v954
    %1831 = vmatprep.subr.mxu0 0.0
    %1832 = vmatpush1.msra.mxu0 %v955
    %1833 = vmatprep.subr.mxu0 0.0
    %1834 = vmatpush1.msra.mxu0 %v956
    %1835 = vmatprep.subr.mxu0 0.0
    %1836 = vmatpush1.msra.mxu0 %v957
    %1837 = vmatprep.subr.mxu0 0.0
    %1838 = vmatpush1.msra.mxu0 %v958
    %1839 = vmatprep.subr.mxu0 0.0
    %1840 = vmatpush1.msra.mxu0 %v959
    %1841 = vmatprep.subr.mxu0 0.0
    %1842 = vmatpush1.msra.mxu0 %v960
    %1843 = vmatprep.subr.mxu0 0.0
    %1844 = vmatpush1.msra.mxu0 %v961
    %1845 = vmatprep.subr.mxu0 0.0
    %1846 = vmatpush1.msra.mxu0 %v962
    %1847 = vmatprep.subr.mxu0 0.0
    %1848 = vmatpush1.msra.mxu0 %v963
    %1849 = vmatprep.subr.mxu0 0.0
    %1850 = vmatpush1.msra.mxu0 %v964
    %1851 = vmatprep.subr.mxu0 0.0
    %1852 = vmatpush1.msra.mxu0 %v965
    %1853 = vmatprep.subr.mxu0 0.0
    %1854 = vmatpush1.msra.mxu0 %v966
    %1855 = vmatprep.subr.mxu0 0.0
    %1856 = vmatpush1.msra.mxu0 %v967
    %1857 = vmatprep.subr.mxu0 0.0
    %1858 = vmatpush1.msra.mxu0 %v968
    %1859 = vmatprep.subr.mxu0 0.0
    %1860 = vmatpush1.msra.mxu0 %v969
    %1861 = vmatprep.subr.mxu0 0.0
    %1862 = vmatpush1.msra.mxu0 %v970
    %1863 = vmatprep.subr.mxu0 0.0
    %1864 = vmatpush1.msra.mxu0 %v971
    %1865 = vmatprep.subr.mxu0 0.0
    %1866 = vmatpush1.msra.mxu0 %v972
    %1867 = vmatprep.subr.mxu0 0.0
    %1868 = vmatpush1.msra.mxu0 %v973
    %1869 = vmatprep.subr.mxu0 0.0
    %1870 = vmatpush1.msra.mxu0 %v974
    %1871 = vmatprep.subr.mxu0 0.0
    %1872 = vmatpush1.msra.mxu0 %v975
    %1873 = vmatprep.subr.mxu0 0.0
    %1874 = vmatpush1.msra.mxu0 %v976
    %1875 = vmatprep.subr.mxu0 0.0
    %1876 = vmatpush1.msra.mxu0 %v977
    %1877 = vmatprep.subr.mxu0 0.0
    %1878 = vmatpush1.msra.mxu0 %v978
    %1879 = vmatprep.subr.mxu0 0.0
    %1880 = vmatpush1.msra.mxu0 %v979
    %1881 = vmatprep.subr.mxu0 0.0
    %1882 = vmatpush1.msra.mxu0 %v980
    %1883 = vmatprep.subr.mxu0 0.0
    %1884 = vmatpush1.msra.mxu0 %v981
    %1885 = vmatprep.subr.mxu0 0.0
    %1886 = vmatpush1.msra.mxu0 %v982
    %1887 = vmatprep.subr.mxu0 0.0
    %1888 = vmatpush1.msra.mxu0 %v983
    %1889 = vmatprep.subr.mxu0 0.0
    %1890 = vmatpush1.msra.mxu0 %v984
    %1891 = vmatprep.subr.mxu0 0.0
    %1892 = vmatpush1.msra.mxu0 %v985
    %1893 = vmatprep.mubr.f32.mxu0 %v1233
    %1894 = vmatmul.mubr.f32.gmra.mrb[0].mxu0 %v1219
    %v1895 = vpop.f32.mrb[0].mxu0
    %v1896 = vadd.f32 %v1826, %v1895
    %v1897 = vpop.f32.mrb[0].mxu0
    %1898 = vdwg.mxu0
    %1899 = vmatprep.subr.mxu0 0.0
    %1900 = vmatpush1.msra.mxu0 %v986
    %1901 = vmatprep.subr.mxu0 0.0
    %1902 = vmatpush1.msra.mxu0 %v987
    %1903 = vmatprep.subr.mxu0 0.0
    %1904 = vmatpush1.msra.mxu0 %v988
    %1905 = vmatprep.subr.mxu0 0.0
    %1906 = vmatpush1.msra.mxu0 %v989
    %1907 = vmatprep.subr.mxu0 0.0
    %1908 = vmatpush1.msra.mxu0 %v990
    %1909 = vmatprep.subr.mxu0 0.0
    %1910 = vmatpush1.msra.mxu0 %v991
    %1911 = vmatprep.subr.mxu0 0.0
    %1912 = vmatpush1.msra.mxu0 %v992
    %1913 = vmatprep.subr.mxu0 0.0
    %1914 = vmatpush1.msra.mxu0 %v993
    %1915 = vmatprep.subr.mxu0 0.0
    %1916 = vmatpush1.msra.mxu0 %v994
    %1917 = vmatprep.subr.mxu0 0.0
    %1918 = vmatpush1.msra.mxu0 %v995
    %1919 = vmatprep.subr.mxu0 0.0
    %1920 = vmatpush1.msra.mxu0 %v996
    %1921 = vmatprep.subr.mxu0 0.0
    %1922 = vmatpush1.msra.mxu0 %v997
    %1923 = vmatprep.subr.mxu0 0.0
    %1924 = vmatpush1.msra.mxu0 %v998
    %1925 = vmatprep.subr.mxu0 0.0
    %1926 = vmatpush1.msra.mxu0 %v999
    %1927 = vmatprep.subr.mxu0 0.0
    %1928 = vmatpush1.msra.mxu0 %v1000
    %1929 = vmatprep.subr.mxu0 0.0
    %1930 = vmatpush1.msra.mxu0 %v1001
    %1931 = vmatprep.subr.mxu0 0.0
    %1932 = vmatpush1.msra.mxu0 %v1002
    %1933 = vmatprep.subr.mxu0 0.0
    %1934 = vmatpush1.msra.mxu0 %v1003
    %1935 = vmatprep.subr.mxu0 0.0
    %1936 = vmatpush1.msra.mxu0 %v1004
    %1937 = vmatprep.subr.mxu0 0.0
    %1938 = vmatpush1.msra.mxu0 %v1005
    %1939 = vmatprep.subr.mxu0 0.0
    %1940 = vmatpush1.msra.mxu0 %v1006
    %1941 = vmatprep.subr.mxu0 0.0
    %1942 = vmatpush1.msra.mxu0 %v1007
    %1943 = vmatprep.subr.mxu0 0.0
    %1944 = vmatpush1.msra.mxu0 %v1008
    %1945 = vmatprep.subr.mxu0 0.0
    %1946 = vmatpush1.msra.mxu0 %v1009
    %1947 = vmatprep.subr.mxu0 0.0
    %1948 = vmatpush1.msra.mxu0 %v1010
    %1949 = vmatprep.subr.mxu0 0.0
    %1950 = vmatpush1.msra.mxu0 %v1011
    %1951 = vmatprep.subr.mxu0 0.0
    %1952 = vmatpush1.msra.mxu0 %v1012
    %1953 = vmatprep.subr.mxu0 0.0
    %1954 = vmatpush1.msra.mxu0 %v1013
    %1955 = vmatprep.subr.mxu0 0.0
    %1956 = vmatpush1.msra.mxu0 %v1014
    %1957 = vmatprep.subr.mxu0 0.0
    %1958 = vmatpush1.msra.mxu0 %v1015
    %1959 = vmatprep.subr.mxu0 0.0
    %1960 = vmatpush1.msra.mxu0 %v1016
    %1961 = vmatprep.subr.mxu0 0.0
    %1962 = vmatpush1.msra.mxu0 %v1017
    %1963 = vmatprep.mubr.f32.mxu0 %v1243
    %1964 = vmatmul.mubr.f32.gmra.mrb[0].mxu0 %v1241
    %v1965 = vpop.f32.mrb[0].mxu0
    %v1966 = vadd.f32 %v1896, %v1965
    %v1967 = vpop.f32.mrb[0].mxu0
    %1968 = vdwg.mxu0
    %1969 = vmatprep.subr.mxu0 0.0
    %1970 = vmatpush1.msra.mxu0 %v1018
    %1971 = vmatprep.subr.mxu0 0.0
    %1972 = vmatpush1.msra.mxu0 %v1019
    %1973 = vmatprep.subr.mxu0 0.0
    %1974 = vmatpush1.msra.mxu0 %v1020
    %1975 = vmatprep.subr.mxu0 0.0
    %1976 = vmatpush1.msra.mxu0 %v1021
    %1977 = vmatprep.subr.mxu0 0.0
    %1978 = vmatpush1.msra.mxu0 %v1022
    %1979 = vmatprep.subr.mxu0 0.0
    %1980 = vmatpush1.msra.mxu0 %v1023
    %1981 = vmatprep.subr.mxu0 0.0
    %1982 = vmatpush1.msra.mxu0 %v1024
    %1983 = vmatprep.subr.mxu0 0.0
    %1984 = vmatpush1.msra.mxu0 %v1025
    %1985 = vmatprep.subr.mxu0 0.0
    %1986 = vmatpush1.msra.mxu0 %v1026
    %1987 = vmatprep.subr.mxu0 0.0
    %1988 = vmatpush1.msra.mxu0 %v1027
    %1989 = vmatprep.subr.mxu0 0.0
    %1990 = vmatpush1.msra.mxu0 %v1028
    %1991 = vmatprep.subr.mxu0 0.0
    %1992 = vmatpush1.msra.mxu0 %v1029
    %1993 = vmatprep.subr.mxu0 0.0
    %1994 = vmatpush1.msra.mxu0 %v1030
    %1995 = vmatprep.subr.mxu0 0.0
    %1996 = vmatpush1.msra.mxu0 %v1031
    %1997 = vmatprep.subr.mxu0 0.0
    %1998 = vmatpush1.msra.mxu0 %v1032
    %1999 = vmatprep.subr.mxu0 0.0
    %2000 = vmatpush1.msra.mxu0 %v1033
    %2001 = vmatprep.subr.mxu0 0.0
    %2002 = vmatpush1.msra.mxu0 %v1034
    %2003 = vmatprep.subr.mxu0 0.0
    %2004 = vmatpush1.msra.mxu0 %v1035
    %2005 = vmatprep.subr.mxu0 0.0
    %2006 = vmatpush1.msra.mxu0 %v1036
    %2007 = vmatprep.subr.mxu0 0.0
    %2008 = vmatpush1.msra.mxu0 %v1037
    %2009 = vmatprep.subr.mxu0 0.0
    %2010 = vmatpush1.msra.mxu0 %v1038
    %2011 = vmatprep.subr.mxu0 0.0
    %2012 = vmatpush1.msra.mxu0 %v1039
    %2013 = vmatprep.subr.mxu0 0.0
    %2014 = vmatpush1.msra.mxu0 %v1040
    %2015 = vmatprep.subr.mxu0 0.0
    %2016 = vmatpush1.msra.mxu0 %v1041
    %2017 = vmatprep.subr.mxu0 0.0
    %2018 = vmatpush1.msra.mxu0 %v1042
    %2019 = vmatprep.subr.mxu0 0.0
    %2020 = vmatpush1.msra.mxu0 %v1043
    %2021 = vmatprep.subr.mxu0 0.0
    %2022 = vmatpush1.msra.mxu0 %v1044
    %2023 = vmatprep.subr.mxu0 0.0
    %2024 = vmatpush1.msra.mxu0 %v1045
    %2025 = vmatprep.subr.mxu0 0.0
    %2026 = vmatpush1.msra.mxu0 %v1046
    %2027 = vmatprep.subr.mxu0 0.0
    %2028 = vmatpush1.msra.mxu0 %v1047
    %2029 = vmatprep.subr.mxu0 0.0
    %2030 = vmatpush1.msra.mxu0 %v1048
    %2031 = vmatprep.subr.mxu0 0.0
    %2032 = vmatpush1.msra.mxu0 %v1049
    %2033 = vmatprep.mubr.f32.mxu0 %v1240
    %2034 = vmatmul.mubr.f32.gmra.mrb[0].mxu0 %v1226
    %v2035 = vpop.f32.mrb[0].mxu0
    %v2036 = vadd.f32 %v1966, %v2035
    %v2037 = vpop.f32.mrb[0].mxu0
    %2038 = vdwg.mxu0
    %2039 = vmatprep.subr.mxu0 0.0
    %2040 = vmatpush1.msra.mxu0 %v1050
    %2041 = vmatprep.subr.mxu0 0.0
    %2042 = vmatpush1.msra.mxu0 %v1051
    %2043 = vmatprep.subr.mxu0 0.0
    %2044 = vmatpush1.msra.mxu0 %v1052
    %2045 = vmatprep.subr.mxu0 0.0
    %2046 = vmatpush1.msra.mxu0 %v1053
    %2047 = vmatprep.subr.mxu0 0.0
    %2048 = vmatpush1.msra.mxu0 %v1054
    %2049 = vmatprep.subr.mxu0 0.0
    %2050 = vmatpush1.msra.mxu0 %v1055
    %2051 = vmatprep.subr.mxu0 0.0
    %2052 = vmatpush1.msra.mxu0 %v1056
    %2053 = vmatprep.subr.mxu0 0.0
    %2054 = vmatpush1.msra.mxu0 %v1057
    %2055 = vmatprep.subr.mxu0 0.0
    %2056 = vmatpush1.msra.mxu0 %v1058
    %2057 = vmatprep.subr.mxu0 0.0
    %2058 = vmatpush1.msra.mxu0 %v1059
    %2059 = vmatprep.subr.mxu0 0.0
    %2060 = vmatpush1.msra.mxu0 %v1060
    %2061 = vmatprep.subr.mxu0 0.0
    %2062 = vmatpush1.msra.mxu0 %v1061
    %2063 = vmatprep.subr.mxu0 0.0
    %2064 = vmatpush1.msra.mxu0 %v1062
    %2065 = vmatprep.subr.mxu0 0.0
    %2066 = vmatpush1.msra.mxu0 %v1063
    %2067 = vmatprep.subr.mxu0 0.0
    %2068 = vmatpush1.msra.mxu0 %v1064
    %2069 = vmatprep.subr.mxu0 0.0
    %2070 = vmatpush1.msra.mxu0 %v1065
    %2071 = vmatprep.subr.mxu0 0.0
    %2072 = vmatpush1.msra.mxu0 %v1066
    %2073 = vmatprep.subr.mxu0 0.0
    %2074 = vmatpush1.msra.mxu0 %v1067
    %2075 = vmatprep.subr.mxu0 0.0
    %2076 = vmatpush1.msra.mxu0 %v1068
    %2077 = vmatprep.subr.mxu0 0.0
    %2078 = vmatpush1.msra.mxu0 %v1069
    %2079 = vmatprep.subr.mxu0 0.0
    %2080 = vmatpush1.msra.mxu0 %v1070
    %2081 = vmatprep.subr.mxu0 0.0
    %2082 = vmatpush1.msra.mxu0 %v1071
    %2083 = vmatprep.subr.mxu0 0.0
    %2084 = vmatpush1.msra.mxu0 %v1072
    %2085 = vmatprep.subr.mxu0 0.0
    %2086 = vmatpush1.msra.mxu0 %v1073
    %2087 = vmatprep.subr.mxu0 0.0
    %2088 = vmatpush1.msra.mxu0 %v1074
    %2089 = vmatprep.subr.mxu0 0.0
    %2090 = vmatpush1.msra.mxu0 %v1075
    %2091 = vmatprep.subr.mxu0 0.0
    %2092 = vmatpush1.msra.mxu0 %v1076
    %2093 = vmatprep.subr.mxu0 0.0
    %2094 = vmatpush1.msra.mxu0 %v1077
    %2095 = vmatprep.subr.mxu0 0.0
    %2096 = vmatpush1.msra.mxu0 %v1078
    %2097 = vmatprep.subr.mxu0 0.0
    %2098 = vmatpush1.msra.mxu0 %v1079
    %2099 = vmatprep.subr.mxu0 0.0
    %2100 = vmatpush1.msra.mxu0 %v1080
    %2101 = vmatprep.subr.mxu0 0.0
    %2102 = vmatpush1.msra.mxu0 %v1081
    %2103 = vmatprep.mubr.f32.mxu0 %v1244
    %2104 = vmatmul.mubr.f32.gmra.mrb[0].mxu0 %v1242
    %v2105 = vpop.f32.mrb[0].mxu0
    %v2106 = vadd.f32 %v2036, %v2105
    %v2107 = vpop.f32.mrb[0].mxu0
    %2108 = vdwg.mxu0
    %vm2109 = vcmask 254976
    %2110 = vst.msk [vmem:[#allocation2] sm:$0x3] %vm2109, %v2106
    // Predicated region
    $region22: #{encoder_forward.1} parent=1 // pred_check
      _
    $region23: #{encoder_forward.1} parent=1 // pred_check_branch
      %2112 = sbr.rel (0) target = $region25
    $region24: #{encoder_forward.1} parent=1 // pred_region
      %s2114 = ssub.s32 32, 32
      %2115 = vsyncadd [#allocation3], %s2114
      %s2117 = sshll.u32 [#allocation2], 4
      %s2118 = int_to_ptr.vmem [resolvable:$true] %s2117
      %2120 = dma.vmem_to_hbm [thread:$0]  %s2118, 32, %s5, [#allocation3]
    $region25: #{encoder_forward.1} parent=1 // pred_fallthru
      _
    // Predicated region
    $region26: #{encoder_forward.1} parent=1 // pred_check
      _
    $region27: #{encoder_forward.1} parent=1 // pred_check_branch
      %2122 = sbr.rel (0) target = $region29
    $region28: #{encoder_forward.1} parent=1 // pred_region
      %2123 = dma.done [#allocation3], 32
    $region29: #{encoder_forward.1} parent=1 // pred_fallthru
      _
    %2124 = vsyncpa [#allocation3], 1

</llo_original>
